<compile_context>
chip_gen: v5e
topology: v5e:2x2
jax: 0.10.0
libtpu: 0.0.40
codegen_flags: <defaults>
</compile_context>

<pallas_src>
import functools
import math

import jax
import jax.numpy as jnp
from jax import lax
from jax.experimental import pallas as pl
from jax.experimental.pallas import tpu as pltpu

# ----------------------------- model config (small synthetic BERT) ----------
VOCAB = 100
TYPE_VOCAB = 2
MAX_POS = 16
HIDDEN = 32
NUM_HEADS = 4
HEAD_DIM = HIDDEN // NUM_HEADS
FFN = 64
NUM_LAYERS = 2
SEQ = 8
BATCH = 2
CLASS_SIZE = 2
LN_EPS = 1e-12
ATTN_SCALE = 1.0 / math.sqrt(HEAD_DIM)
BS = BATCH * SEQ


# ----------------------------- shared math helpers ---------------------------
def _layernorm(x, g, b):
    mean = jnp.mean(x, axis=-1, keepdims=True)
    var = jnp.mean((x - mean) ** 2, axis=-1, keepdims=True)
    return (x - mean) * lax.rsqrt(var + LN_EPS) * g + b


def _gelu(x):
    # tanh-approx GELU (goes to the EUP slot; effectively free next to the MXU)
    # TODO(synk): HF BertIntermediate uses exact erf GELU; tanh approx kept for
    # robust Mosaic lowering — difference is ~1e-3 relative at these scales.
    c = math.sqrt(2.0 / math.pi)
    return 0.5 * x * (1.0 + jnp.tanh(c * (x + 0.044715 * x * x * x)))


# ----------------------------- the fused Pallas kernel -----------------------
def _bert_fused_kernel(
    emb_ref, mask_bias_ref,
    emb_ln_g_ref, emb_ln_b_ref,
    qkv_w_ref, qkv_b_ref,
    o_w_ref, o_b_ref,
    ln1_g_ref, ln1_b_ref,
    f1_w_ref, f1_b_ref,
    f2_w_ref, f2_b_ref,
    ln2_g_ref, ln2_b_ref,
    pool_w_ref, pool_b_ref,
    cls_w_ref, cls_b_ref,
    logits_ref,
):
    # ---- embedding LayerNorm (no residual, no zeros buffer) ----
    h = _layernorm(emb_ref[...], emb_ln_g_ref[...], emb_ln_b_ref[...])  # (B*S, H)

    # combined (B*S, B*S) additive bias: padding mask + cross-batch block mask
    mask_bias = mask_bias_ref[...]

    # ---- encoder layers, fully unrolled (weights are stacked along dim 0) ----
    for l in range(NUM_LAYERS):
        # fused QKV projection: one (B*S, H) x (H, 3H) matmul
        qkv = jnp.dot(h, qkv_w_ref[l],
                      preferred_element_type=jnp.float32) + qkv_b_ref[l]   # (B*S, 3H)
        # fold the 1/sqrt(dh) scale into Q once per layer (single VPU mul)
        q = qkv[:, 0:HIDDEN] * ATTN_SCALE
        k = qkv[:, HIDDEN:2 * HIDDEN]
        v = qkv[:, 2 * HIDDEN:3 * HIDDEN]

        o_w = o_w_ref[l]                                                    # (H, H)

        # attention over all (batch, head) pairs with BOTH batches fused into
        # one (B*S, B*S) score matrix per head; cross-batch attention is killed
        # by the precomputed block-diagonal bias, so the softmax is identical
        # to per-batch softmax (masked columns underflow to exactly 0).
        attn_out = jnp.zeros((BS, HIDDEN), jnp.float32)
        for hh in range(NUM_HEADS):
            c0 = hh * HEAD_DIM
            q_h = q[:, c0:c0 + HEAD_DIM]                                    # (B*S, dh)
            k_h = k[:, c0:c0 + HEAD_DIM]
            v_h = v[:, c0:c0 + HEAD_DIM]
            s = lax.dot_general(
                q_h, k_h, (((1,), (1,)), ((), ())),
                preferred_element_type=jnp.float32)                         # (B*S, B*S)
            s = s + mask_bias
            s = s - jnp.max(s, axis=-1, keepdims=True)
            p = jnp.exp(s)
            p = p / jnp.sum(p, axis=-1, keepdims=True)
            ctx = jnp.dot(p, v_h,
                          preferred_element_type=jnp.float32)               # (B*S, dh)
            # fold the output projection per head block: avoids any lane-axis
            # concatenation of head_dim=8 pieces.
            attn_out = attn_out + jnp.dot(ctx, o_w[c0:c0 + HEAD_DIM, :],
                                          preferred_element_type=jnp.float32)
        attn_out = attn_out + o_b_ref[l]                                    # (B*S, H)

        # residual + LayerNorm 1
        h = _layernorm(attn_out + h, ln1_g_ref[l], ln1_b_ref[l])

        # FFN: dense -> GELU -> dense, residual + LayerNorm 2
        ffn = jnp.dot(h, f1_w_ref[l],
                      preferred_element_type=jnp.float32) + f1_b_ref[l]     # (B*S, FFN)
        ffn = _gelu(ffn)
        ffn = jnp.dot(ffn, f2_w_ref[l],
                      preferred_element_type=jnp.float32) + f2_b_ref[l]     # (B*S, H)
        h = _layernorm(ffn + h, ln2_g_ref[l], ln2_b_ref[l])

    # ---- fused pooler ([CLS] slice + dense + tanh) and classifier ----
    cls_tok = jnp.concatenate([h[b * SEQ:b * SEQ + 1, :] for b in range(BATCH)],
                              axis=0)                                        # (B, H)
    pooled = jnp.tanh(jnp.dot(cls_tok, pool_w_ref[...],
                              preferred_element_type=jnp.float32) + pool_b_ref[...])
    logits = jnp.dot(pooled, cls_w_ref[...],
                     preferred_element_type=jnp.float32) + cls_b_ref[...]    # (B, C)
    logits_ref[...] = logits


# ----------------------------- parameter init --------------------------------
def init_params(key):
    def nrm(k, shape):
        return jax.random.normal(k, shape, jnp.float32) * 0.02

    keys = iter(jax.random.split(key, 16))
    params = {
        "word_emb": nrm(next(keys), (VOCAB, HIDDEN)),
        "pos_emb": nrm(next(keys), (MAX_POS, HIDDEN)),
        "type_emb": nrm(next(keys), (TYPE_VOCAB, HIDDEN)),
        "emb_ln_g": jnp.ones((1, HIDDEN), jnp.float32),
        "emb_ln_b": jnp.zeros((1, HIDDEN), jnp.float32),
        # per-layer weights stacked along dim 0; qkv_w is the Q|K|V concatenation
        "qkv_w": nrm(next(keys), (NUM_LAYERS, HIDDEN, 3 * HIDDEN)),
        "qkv_b": jnp.zeros((NUM_LAYERS, 1, 3 * HIDDEN), jnp.float32),
        "o_w": nrm(next(keys), (NUM_LAYERS, HIDDEN, HIDDEN)),
        "o_b": jnp.zeros((NUM_LAYERS, 1, HIDDEN), jnp.float32),
        "ln1_g": jnp.ones((NUM_LAYERS, 1, HIDDEN), jnp.float32),
        "ln1_b": jnp.zeros((NUM_LAYERS, 1, HIDDEN), jnp.float32),
        "f1_w": nrm(next(keys), (NUM_LAYERS, HIDDEN, FFN)),
        "f1_b": jnp.zeros((NUM_LAYERS, 1, FFN), jnp.float32),
        "f2_w": nrm(next(keys), (NUM_LAYERS, FFN, HIDDEN)),
        "f2_b": jnp.zeros((NUM_LAYERS, 1, HIDDEN), jnp.float32),
        "ln2_g": jnp.ones((NUM_LAYERS, 1, HIDDEN), jnp.float32),
        "ln2_b": jnp.zeros((NUM_LAYERS, 1, HIDDEN), jnp.float32),
        "pool_w": nrm(next(keys), (HIDDEN, HIDDEN)),
        "pool_b": jnp.zeros((1, HIDDEN), jnp.float32),
        "cls_w": nrm(next(keys), (HIDDEN, CLASS_SIZE)),
        "cls_b": jnp.zeros((1, CLASS_SIZE), jnp.float32),
    }
    return params


# ----------------------------- forward pass ----------------------------------
def bert_sst2_forward(params, input_ids, token_type_ids, attention_mask):
    # embedding gathers are glue in plain JAX (no clean Pallas gather at this size)
    word = jnp.take(params["word_emb"], input_ids, axis=0)                    # (B,S,H)
    pos = params["pos_emb"][:SEQ][None, :, :]                                 # (1,S,H)
    typ = jnp.take(params["type_emb"], token_type_ids, axis=0)                # (B,S,H)
    emb = (word + pos + typ).reshape(BS, HIDDEN).astype(jnp.float32)

    # Combined (B*S, B*S) additive bias, precomputed ONCE:
    #   * padding-mask bias on key positions (within the same batch)
    #   * -1e9 on every cross-batch (row batch != col batch) entry so the fused
    #     two-batch attention is equivalent to per-batch attention.
    am = attention_mask.astype(jnp.float32)                                   # (B, S)
    key_pad_bias = ((1.0 - am) * (-1e9)).reshape(BS)                          # (B*S,)
    tok_batch = jnp.arange(BS, dtype=jnp.int32) // SEQ                        # (B*S,)
    same_batch = (tok_batch[:, None] == tok_batch[None, :]).astype(jnp.float32)
    mask_bias = same_batch * key_pad_bias[None, :] + (1.0 - same_batch) * (-1e9)
    mask_bias = mask_bias.astype(jnp.float32)                                 # (B*S, B*S)

    return pl.pallas_call(
        _bert_fused_kernel,
        out_shape=jax.ShapeDtypeStruct((BATCH, CLASS_SIZE), jnp.float32),
    )(emb, mask_bias,
      params["emb_ln_g"], params["emb_ln_b"],
      params["qkv_w"], params["qkv_b"],
      params["o_w"], params["o_b"],
      params["ln1_g"], params["ln1_b"],
      params["f1_w"], params["f1_b"],
      params["f2_w"], params["f2_b"],
      params["ln2_g"], params["ln2_b"],
      params["pool_w"], params["pool_b"],
      params["cls_w"], params["cls_b"])


# ----------------------------- pure-JAX reference (correctness check) --------
def bert_ref(params, input_ids, token_type_ids, attention_mask):
    word = jnp.take(params["word_emb"], input_ids, axis=0)
    pos = params["pos_emb"][:SEQ][None, :, :]
    typ = jnp.take(params["type_emb"], token_type_ids, axis=0)
    h = (word + pos + typ).reshape(BS, HIDDEN)
    h = _layernorm(h, params["emb_ln_g"], params["emb_ln_b"])
    bias = (1.0 - attention_mask.astype(jnp.float32)) * (-1e9)               # (B,S)

    def split_heads(x):
        return x.reshape(BATCH, SEQ, NUM_HEADS, HEAD_DIM).transpose(0, 2, 1, 3)

    for l in range(NUM_LAYERS):
        qkv = h @ params["qkv_w"][l] + params["qkv_b"][l]
        q, k, v = (qkv[:, :HIDDEN], qkv[:, HIDDEN:2 * HIDDEN], qkv[:, 2 * HIDDEN:])
        qh, kh, vh = split_heads(q), split_heads(k), split_heads(v)
        s = jnp.einsum("bhqd,bhkd->bhqk", qh, kh) * ATTN_SCALE
        s = s + bias[:, None, None, :]
        p = jax.nn.softmax(s, axis=-1)
        ctx = jnp.einsum("bhqk,bhkd->bhqd", p, vh)
        ctx = ctx.transpose(0, 2, 1, 3).reshape(BS, HIDDEN)
        attn_out = ctx @ params["o_w"][l] + params["o_b"][l]
        h = _layernorm(attn_out + h, params["ln1_g"][l], params["ln1_b"][l])
        ffn = _gelu(h @ params["f1_w"][l] + params["f1_b"][l])
        ffn = ffn @ params["f2_w"][l] + params["f2_b"][l]
        h = _layernorm(ffn + h, params["ln2_g"][l], params["ln2_b"][l])

    cls_tok = h.reshape(BATCH, SEQ, HIDDEN)[:, 0, :]
    pooled = jnp.tanh(cls_tok @ params["pool_w"] + params["pool_b"])
    return pooled @ params["cls_w"] + params["cls_b"]


# ----------------------------- main ------------------------------------------
if __name__ == "__main__":
    key = jax.random.PRNGKey(0)
    pkey, ikey = jax.random.split(key)
    params = init_params(pkey)

    input_ids = jax.random.randint(ikey, (BATCH, SEQ), 0, VOCAB, dtype=jnp.int32)
    token_type_ids = jnp.concatenate(
        [jnp.zeros((BATCH, SEQ // 2), jnp.int32),
         jnp.ones((BATCH, SEQ // 2), jnp.int32)], axis=1)
    attention_mask = jnp.ones((BATCH, SEQ), jnp.int32)
    attention_mask = attention_mask.at[1, -2:].set(0)   # pad out last 2 tokens of sample 1

    fwd = jax.jit(functools.partial(bert_sst2_forward, params))
    logits = fwd(input_ids, token_type_ids, attention_mask)
    jax.block_until_ready(logits)
    assert logits.shape == (BATCH, CLASS_SIZE)

    ref = bert_ref(params, input_ids, token_type_ids, attention_mask)
    assert jnp.allclose(logits, ref, atol=2e-3, rtol=2e-3), (logits, ref)
    print("KERNEL_OK")
</pallas_src>

<mosaic_0001>
module attributes {stable_mosaic.version = 11 : i64} {
  func.func @_bert_fused_kernel(%arg0: memref<16x32xf32, #tpu.memory_space<vmem>>, %arg1: memref<16x16xf32, #tpu.memory_space<vmem>>, %arg2: memref<1x32xf32, #tpu.memory_space<vmem>>, %arg3: memref<1x32xf32, #tpu.memory_space<vmem>>, %arg4: memref<2x32x96xf32, #tpu.memory_space<vmem>>, %arg5: memref<2x1x96xf32, #tpu.memory_space<vmem>>, %arg6: memref<2x32x32xf32, #tpu.memory_space<vmem>>, %arg7: memref<2x1x32xf32, #tpu.memory_space<vmem>>, %arg8: memref<2x1x32xf32, #tpu.memory_space<vmem>>, %arg9: memref<2x1x32xf32, #tpu.memory_space<vmem>>, %arg10: memref<2x32x64xf32, #tpu.memory_space<vmem>>, %arg11: memref<2x1x64xf32, #tpu.memory_space<vmem>>, %arg12: memref<2x64x32xf32, #tpu.memory_space<vmem>>, %arg13: memref<2x1x32xf32, #tpu.memory_space<vmem>>, %arg14: memref<2x1x32xf32, #tpu.memory_space<vmem>>, %arg15: memref<2x1x32xf32, #tpu.memory_space<vmem>>, %arg16: memref<32x32xf32, #tpu.memory_space<vmem>>, %arg17: memref<1x32xf32, #tpu.memory_space<vmem>>, %arg18: memref<32x2xf32, #tpu.memory_space<vmem>>, %arg19: memref<1x2xf32, #tpu.memory_space<vmem>>, %arg20: memref<2x2xf32, #tpu.memory_space<vmem>>) attributes {dimension_semantics = [], scalar_prefetch = 0 : i64, scratch_operands = 0 : i64, tpu.core_type = #tpu.core_type<tc>} {
    %c0 = arith.constant 0 : index
    %c0_0 = arith.constant 0 : index
    %0 = vector.load %arg0[%c0, %c0_0] : memref<16x32xf32, #tpu.memory_space<vmem>>, vector<16x32xf32>
    %c0_1 = arith.constant 0 : index
    %c0_2 = arith.constant 0 : index
    %1 = vector.load %arg2[%c0_1, %c0_2] : memref<1x32xf32, #tpu.memory_space<vmem>>, vector<1x32xf32>
    %c0_3 = arith.constant 0 : index
    %c0_4 = arith.constant 0 : index
    %2 = vector.load %arg3[%c0_3, %c0_4] : memref<1x32xf32, #tpu.memory_space<vmem>>, vector<1x32xf32>
    %cst = arith.constant dense<0.000000e+00> : vector<16xf32>
    %3 = vector.multi_reduction <add>, %0, %cst [1] : vector<16x32xf32> to vector<16xf32>
    %4 = vector.shape_cast %3 : vector<16xf32> to vector<16x1xf32>
    %cst_5 = arith.constant 3.200000e+01 : f32
    %5 = vector.broadcast %cst_5 : f32 to vector<16x1xf32>
    %6 = arith.divf %4, %5 : vector<16x1xf32>
    %7 = vector.broadcast %6 : vector<16x1xf32> to vector<16x32xf32>
    %8 = arith.subf %0, %7 : vector<16x32xf32>
    %9 = arith.mulf %8, %8 : vector<16x32xf32>
    %cst_6 = arith.constant dense<0.000000e+00> : vector<16xf32>
    %10 = vector.multi_reduction <add>, %9, %cst_6 [1] : vector<16x32xf32> to vector<16xf32>
    %11 = vector.shape_cast %10 : vector<16xf32> to vector<16x1xf32>
    %cst_7 = arith.constant 3.200000e+01 : f32
    %12 = vector.broadcast %cst_7 : f32 to vector<16x1xf32>
    %13 = arith.divf %11, %12 : vector<16x1xf32>
    %14 = vector.broadcast %6 : vector<16x1xf32> to vector<16x32xf32>
    %15 = arith.subf %0, %14 : vector<16x32xf32>
    %cst_8 = arith.constant 9.99999996E-13 : f32
    %16 = vector.broadcast %cst_8 : f32 to vector<16x1xf32>
    %17 = arith.addf %13, %16 : vector<16x1xf32>
    %18 = math.rsqrt %17 : vector<16x1xf32>
    %19 = vector.broadcast %18 : vector<16x1xf32> to vector<16x32xf32>
    %20 = arith.mulf %15, %19 : vector<16x32xf32>
    %21 = vector.broadcast %1 : vector<1x32xf32> to vector<16x32xf32>
    %22 = arith.mulf %20, %21 : vector<16x32xf32>
    %23 = vector.broadcast %2 : vector<1x32xf32> to vector<16x32xf32>
    %24 = arith.addf %22, %23 : vector<16x32xf32>
    %c0_9 = arith.constant 0 : index
    %c0_10 = arith.constant 0 : index
    %25 = vector.load %arg1[%c0_9, %c0_10] : memref<16x16xf32, #tpu.memory_space<vmem>>, vector<16x16xf32>
    %c0_11 = arith.constant 0 : index
    %c0_12 = arith.constant 0 : index
    %c0_13 = arith.constant 0 : index
    %26 = vector.load %arg4[%c0_11, %c0_12, %c0_13] : memref<2x32x96xf32, #tpu.memory_space<vmem>>, vector<1x32x96xf32>
    %27 = vector.shape_cast %26 : vector<1x32x96xf32> to vector<32x96xf32>
    %cst_14 = arith.constant dense<0.000000e+00> : vector<16x96xf32>
    %28 = tpu.matmul %24, %27, %cst_14 {dimension_numbers = #tpu.dot_dimension_numbers<[1], [0], [0], [1], [0, 0, 1, 1], [], []>} : vector<16x32xf32>, vector<32x96xf32>, vector<16x96xf32> -> vector<16x96xf32>
    %c0_15 = arith.constant 0 : index
    %c0_16 = arith.constant 0 : index
    %c0_17 = arith.constant 0 : index
    %29 = vector.load %arg5[%c0_15, %c0_16, %c0_17] : memref<2x1x96xf32, #tpu.memory_space<vmem>>, vector<1x1x96xf32>
    %30 = vector.shape_cast %29 : vector<1x1x96xf32> to vector<1x96xf32>
    %31 = vector.broadcast %30 : vector<1x96xf32> to vector<16x96xf32>
    %32 = arith.addf %28, %31 : vector<16x96xf32>
    %33 = vector.extract_strided_slice %32 {offsets = [0, 0], sizes = [16, 32], strides = [1, 1]} : vector<16x96xf32> to vector<16x32xf32>
    %cst_18 = arith.constant 0.353553385 : f32
    %34 = vector.broadcast %cst_18 : f32 to vector<16x32xf32>
    %35 = arith.mulf %33, %34 : vector<16x32xf32>
    %36 = vector.extract_strided_slice %32 {offsets = [0, 32], sizes = [16, 32], strides = [1, 1]} : vector<16x96xf32> to vector<16x32xf32>
    %37 = vector.extract_strided_slice %32 {offsets = [0, 64], sizes = [16, 32], strides = [1, 1]} : vector<16x96xf32> to vector<16x32xf32>
    %c0_19 = arith.constant 0 : index
    %c0_20 = arith.constant 0 : index
    %c0_21 = arith.constant 0 : index
    %38 = vector.load %arg6[%c0_19, %c0_20, %c0_21] : memref<2x32x32xf32, #tpu.memory_space<vmem>>, vector<1x32x32xf32>
    %39 = vector.shape_cast %38 : vector<1x32x32xf32> to vector<32x32xf32>
    %cst_22 = arith.constant 0.000000e+00 : f32
    %40 = vector.broadcast %cst_22 : f32 to vector<16x32xf32>
    %41 = vector.extract_strided_slice %35 {offsets = [0, 0], sizes = [16, 8], strides = [1, 1]} : vector<16x32xf32> to vector<16x8xf32>
    %42 = vector.extract_strided_slice %36 {offsets = [0, 0], sizes = [16, 8], strides = [1, 1]} : vector<16x32xf32> to vector<16x8xf32>
    %43 = vector.extract_strided_slice %37 {offsets = [0, 0], sizes = [16, 8], strides = [1, 1]} : vector<16x32xf32> to vector<16x8xf32>
    %cst_23 = arith.constant dense<0.000000e+00> : vector<16x16xf32>
    %44 = tpu.matmul %41, %42, %cst_23 {dimension_numbers = #tpu.dot_dimension_numbers<[1], [1], [0], [0], [0, 0, 1, 0], [], []>} : vector<16x8xf32>, vector<16x8xf32>, vector<16x16xf32> -> vector<16x16xf32>
    %45 = arith.addf %44, %25 : vector<16x16xf32>
    %cst_24 = arith.constant dense<0xFF800000> : vector<16xf32>
    %46 = vector.multi_reduction <maximumf>, %45, %cst_24 [1] : vector<16x16xf32> to vector<16xf32>
    %47 = vector.shape_cast %46 : vector<16xf32> to vector<16x1xf32>
    %48 = vector.broadcast %47 : vector<16x1xf32> to vector<16x16xf32>
    %49 = arith.subf %45, %48 : vector<16x16xf32>
    %50 = math.exp %49 : vector<16x16xf32>
    %cst_25 = arith.constant dense<0.000000e+00> : vector<16xf32>
    %51 = vector.multi_reduction <add>, %50, %cst_25 [1] : vector<16x16xf32> to vector<16xf32>
    %52 = vector.shape_cast %51 : vector<16xf32> to vector<16x1xf32>
    %53 = vector.broadcast %52 : vector<16x1xf32> to vector<16x16xf32>
    %54 = arith.divf %50, %53 : vector<16x16xf32>
    %cst_26 = arith.constant dense<0.000000e+00> : vector<16x8xf32>
    %55 = tpu.matmul %54, %43, %cst_26 {dimension_numbers = #tpu.dot_dimension_numbers<[1], [0], [0], [1], [0, 0, 1, 1], [], []>} : vector<16x16xf32>, vector<16x8xf32>, vector<16x8xf32> -> vector<16x8xf32>
    %56 = vector.extract_strided_slice %39 {offsets = [0, 0], sizes = [8, 32], strides = [1, 1]} : vector<32x32xf32> to vector<8x32xf32>
    %cst_27 = arith.constant dense<0.000000e+00> : vector<16x32xf32>
    %57 = tpu.matmul %55, %56, %cst_27 {dimension_numbers = #tpu.dot_dimension_numbers<[1], [0], [0], [1], [0, 0, 1, 1], [], []>} : vector<16x8xf32>, vector<8x32xf32>, vector<16x32xf32> -> vector<16x32xf32>
    %58 = arith.addf %40, %57 : vector<16x32xf32>
    %59 = vector.extract_strided_slice %35 {offsets = [0, 8], sizes = [16, 8], strides = [1, 1]} : vector<16x32xf32> to vector<16x8xf32>
    %60 = vector.extract_strided_slice %36 {offsets = [0, 8], sizes = [16, 8], strides = [1, 1]} : vector<16x32xf32> to vector<16x8xf32>
    %61 = vector.extract_strided_slice %37 {offsets = [0, 8], sizes = [16, 8], strides = [1, 1]} : vector<16x32xf32> to vector<16x8xf32>
    %cst_28 = arith.constant dense<0.000000e+00> : vector<16x16xf32>
    %62 = tpu.matmul %59, %60, %cst_28 {dimension_numbers = #tpu.dot_dimension_numbers<[1], [1], [0], [0], [0, 0, 1, 0], [], []>} : vector<16x8xf32>, vector<16x8xf32>, vector<16x16xf32> -> vector<16x16xf32>
    %63 = arith.addf %62, %25 : vector<16x16xf32>
    %cst_29 = arith.constant dense<0xFF800000> : vector<16xf32>
    %64 = vector.multi_reduction <maximumf>, %63, %cst_29 [1] : vector<16x16xf32> to vector<16xf32>
    %65 = vector.shape_cast %64 : vector<16xf32> to vector<16x1xf32>
    %66 = vector.broadcast %65 : vector<16x1xf32> to vector<16x16xf32>
    %67 = arith.subf %63, %66 : vector<16x16xf32>
    %68 = math.exp %67 : vector<16x16xf32>
    %cst_30 = arith.constant dense<0.000000e+00> : vector<16xf32>
    %69 = vector.multi_reduction <add>, %68, %cst_30 [1] : vector<16x16xf32> to vector<16xf32>
    %70 = vector.shape_cast %69 : vector<16xf32> to vector<16x1xf32>
    %71 = vector.broadcast %70 : vector<16x1xf32> to vector<16x16xf32>
    %72 = arith.divf %68, %71 : vector<16x16xf32>
    %cst_31 = arith.constant dense<0.000000e+00> : vector<16x8xf32>
    %73 = tpu.matmul %72, %61, %cst_31 {dimension_numbers = #tpu.dot_dimension_numbers<[1], [0], [0], [1], [0, 0, 1, 1], [], []>} : vector<16x16xf32>, vector<16x8xf32>, vector<16x8xf32> -> vector<16x8xf32>
    %74 = vector.extract_strided_slice %39 {offsets = [8, 0], sizes = [8, 32], strides = [1, 1]} : vector<32x32xf32> to vector<8x32xf32>
    %cst_32 = arith.constant dense<0.000000e+00> : vector<16x32xf32>
    %75 = tpu.matmul %73, %74, %cst_32 {dimension_numbers = #tpu.dot_dimension_numbers<[1], [0], [0], [1], [0, 0, 1, 1], [], []>} : vector<16x8xf32>, vector<8x32xf32>, vector<16x32xf32> -> vector<16x32xf32>
    %76 = arith.addf %58, %75 : vector<16x32xf32>
    %77 = vector.extract_strided_slice %35 {offsets = [0, 16], sizes = [16, 8], strides = [1, 1]} : vector<16x32xf32> to vector<16x8xf32>
    %78 = vector.extract_strided_slice %36 {offsets = [0, 16], sizes = [16, 8], strides = [1, 1]} : vector<16x32xf32> to vector<16x8xf32>
    %79 = vector.extract_strided_slice %37 {offsets = [0, 16], sizes = [16, 8], strides = [1, 1]} : vector<16x32xf32> to vector<16x8xf32>
    %cst_33 = arith.constant dense<0.000000e+00> : vector<16x16xf32>
    %80 = tpu.matmul %77, %78, %cst_33 {dimension_numbers = #tpu.dot_dimension_numbers<[1], [1], [0], [0], [0, 0, 1, 0], [], []>} : vector<16x8xf32>, vector<16x8xf32>, vector<16x16xf32> -> vector<16x16xf32>
    %81 = arith.addf %80, %25 : vector<16x16xf32>
    %cst_34 = arith.constant dense<0xFF800000> : vector<16xf32>
    %82 = vector.multi_reduction <maximumf>, %81, %cst_34 [1] : vector<16x16xf32> to vector<16xf32>
    %83 = vector.shape_cast %82 : vector<16xf32> to vector<16x1xf32>
    %84 = vector.broadcast %83 : vector<16x1xf32> to vector<16x16xf32>
    %85 = arith.subf %81, %84 : vector<16x16xf32>
    %86 = math.exp %85 : vector<16x16xf32>
    %cst_35 = arith.constant dense<0.000000e+00> : vector<16xf32>
    %87 = vector.multi_reduction <add>, %86, %cst_35 [1] : vector<16x16xf32> to vector<16xf32>
    %88 = vector.shape_cast %87 : vector<16xf32> to vector<16x1xf32>
    %89 = vector.broadcast %88 : vector<16x1xf32> to vector<16x16xf32>
    %90 = arith.divf %86, %89 : vector<16x16xf32>
    %cst_36 = arith.constant dense<0.000000e+00> : vector<16x8xf32>
    %91 = tpu.matmul %90, %79, %cst_36 {dimension_numbers = #tpu.dot_dimension_numbers<[1], [0], [0], [1], [0, 0, 1, 1], [], []>} : vector<16x16xf32>, vector<16x8xf32>, vector<16x8xf32> -> vector<16x8xf32>
    %92 = vector.extract_strided_slice %39 {offsets = [16, 0], sizes = [8, 32], strides = [1, 1]} : vector<32x32xf32> to vector<8x32xf32>
    %cst_37 = arith.constant dense<0.000000e+00> : vector<16x32xf32>
    %93 = tpu.matmul %91, %92, %cst_37 {dimension_numbers = #tpu.dot_dimension_numbers<[1], [0], [0], [1], [0, 0, 1, 1], [], []>} : vector<16x8xf32>, vector<8x32xf32>, vector<16x32xf32> -> vector<16x32xf32>
    %94 = arith.addf %76, %93 : vector<16x32xf32>
    %95 = vector.extract_strided_slice %35 {offsets = [0, 24], sizes = [16, 8], strides = [1, 1]} : vector<16x32xf32> to vector<16x8xf32>
    %96 = vector.extract_strided_slice %36 {offsets = [0, 24], sizes = [16, 8], strides = [1, 1]} : vector<16x32xf32> to vector<16x8xf32>
    %97 = vector.extract_strided_slice %37 {offsets = [0, 24], sizes = [16, 8], strides = [1, 1]} : vector<16x32xf32> to vector<16x8xf32>
    %cst_38 = arith.constant dense<0.000000e+00> : vector<16x16xf32>
    %98 = tpu.matmul %95, %96, %cst_38 {dimension_numbers = #tpu.dot_dimension_numbers<[1], [1], [0], [0], [0, 0, 1, 0], [], []>} : vector<16x8xf32>, vector<16x8xf32>, vector<16x16xf32> -> vector<16x16xf32>
    %99 = arith.addf %98, %25 : vector<16x16xf32>
    %cst_39 = arith.constant dense<0xFF800000> : vector<16xf32>
    %100 = vector.multi_reduction <maximumf>, %99, %cst_39 [1] : vector<16x16xf32> to vector<16xf32>
    %101 = vector.shape_cast %100 : vector<16xf32> to vector<16x1xf32>
    %102 = vector.broadcast %101 : vector<16x1xf32> to vector<16x16xf32>
    %103 = arith.subf %99, %102 : vector<16x16xf32>
    %104 = math.exp %103 : vector<16x16xf32>
    %cst_40 = arith.constant dense<0.000000e+00> : vector<16xf32>
    %105 = vector.multi_reduction <add>, %104, %cst_40 [1] : vector<16x16xf32> to vector<16xf32>
    %106 = vector.shape_cast %105 : vector<16xf32> to vector<16x1xf32>
    %107 = vector.broadcast %106 : vector<16x1xf32> to vector<16x16xf32>
    %108 = arith.divf %104, %107 : vector<16x16xf32>
    %cst_41 = arith.constant dense<0.000000e+00> : vector<16x8xf32>
    %109 = tpu.matmul %108, %97, %cst_41 {dimension_numbers = #tpu.dot_dimension_numbers<[1], [0], [0], [1], [0, 0, 1, 1], [], []>} : vector<16x16xf32>, vector<16x8xf32>, vector<16x8xf32> -> vector<16x8xf32>
    %110 = vector.extract_strided_slice %39 {offsets = [24, 0], sizes = [8, 32], strides = [1, 1]} : vector<32x32xf32> to vector<8x32xf32>
    %cst_42 = arith.constant dense<0.000000e+00> : vector<16x32xf32>
    %111 = tpu.matmul %109, %110, %cst_42 {dimension_numbers = #tpu.dot_dimension_numbers<[1], [0], [0], [1], [0, 0, 1, 1], [], []>} : vector<16x8xf32>, vector<8x32xf32>, vector<16x32xf32> -> vector<16x32xf32>
    %112 = arith.addf %94, %111 : vector<16x32xf32>
    %c0_43 = arith.constant 0 : index
    %c0_44 = arith.constant 0 : index
    %c0_45 = arith.constant 0 : index
    %113 = vector.load %arg7[%c0_43, %c0_44, %c0_45] : memref<2x1x32xf32, #tpu.memory_space<vmem>>, vector<1x1x32xf32>
    %114 = vector.shape_cast %113 : vector<1x1x32xf32> to vector<1x32xf32>
    %115 = vector.broadcast %114 : vector<1x32xf32> to vector<16x32xf32>
    %116 = arith.addf %112, %115 : vector<16x32xf32>
    %117 = arith.addf %116, %24 : vector<16x32xf32>
    %c0_46 = arith.constant 0 : index
    %c0_47 = arith.constant 0 : index
    %c0_48 = arith.constant 0 : index
    %118 = vector.load %arg8[%c0_46, %c0_47, %c0_48] : memref<2x1x32xf32, #tpu.memory_space<vmem>>, vector<1x1x32xf32>
    %119 = vector.shape_cast %118 : vector<1x1x32xf32> to vector<1x32xf32>
    %c0_49 = arith.constant 0 : index
    %c0_50 = arith.constant 0 : index
    %c0_51 = arith.constant 0 : index
    %120 = vector.load %arg9[%c0_49, %c0_50, %c0_51] : memref<2x1x32xf32, #tpu.memory_space<vmem>>, vector<1x1x32xf32>
    %121 = vector.shape_cast %120 : vector<1x1x32xf32> to vector<1x32xf32>
    %cst_52 = arith.constant dense<0.000000e+00> : vector<16xf32>
    %122 = vector.multi_reduction <add>, %117, %cst_52 [1] : vector<16x32xf32> to vector<16xf32>
    %123 = vector.shape_cast %122 : vector<16xf32> to vector<16x1xf32>
    %cst_53 = arith.constant 3.200000e+01 : f32
    %124 = vector.broadcast %cst_53 : f32 to vector<16x1xf32>
    %125 = arith.divf %123, %124 : vector<16x1xf32>
    %126 = vector.broadcast %125 : vector<16x1xf32> to vector<16x32xf32>
    %127 = arith.subf %117, %126 : vector<16x32xf32>
    %128 = arith.mulf %127, %127 : vector<16x32xf32>
    %cst_54 = arith.constant dense<0.000000e+00> : vector<16xf32>
    %129 = vector.multi_reduction <add>, %128, %cst_54 [1] : vector<16x32xf32> to vector<16xf32>
    %130 = vector.shape_cast %129 : vector<16xf32> to vector<16x1xf32>
    %cst_55 = arith.constant 3.200000e+01 : f32
    %131 = vector.broadcast %cst_55 : f32 to vector<16x1xf32>
    %132 = arith.divf %130, %131 : vector<16x1xf32>
    %133 = vector.broadcast %125 : vector<16x1xf32> to vector<16x32xf32>
    %134 = arith.subf %117, %133 : vector<16x32xf32>
    %cst_56 = arith.constant 9.99999996E-13 : f32
    %135 = vector.broadcast %cst_56 : f32 to vector<16x1xf32>
    %136 = arith.addf %132, %135 : vector<16x1xf32>
    %137 = math.rsqrt %136 : vector<16x1xf32>
    %138 = vector.broadcast %137 : vector<16x1xf32> to vector<16x32xf32>
    %139 = arith.mulf %134, %138 : vector<16x32xf32>
    %140 = vector.broadcast %119 : vector<1x32xf32> to vector<16x32xf32>
    %141 = arith.mulf %139, %140 : vector<16x32xf32>
    %142 = vector.broadcast %121 : vector<1x32xf32> to vector<16x32xf32>
    %143 = arith.addf %141, %142 : vector<16x32xf32>
    %c0_57 = arith.constant 0 : index
    %c0_58 = arith.constant 0 : index
    %c0_59 = arith.constant 0 : index
    %144 = vector.load %arg10[%c0_57, %c0_58, %c0_59] : memref<2x32x64xf32, #tpu.memory_space<vmem>>, vector<1x32x64xf32>
    %145 = vector.shape_cast %144 : vector<1x32x64xf32> to vector<32x64xf32>
    %cst_60 = arith.constant dense<0.000000e+00> : vector<16x64xf32>
    %146 = tpu.matmul %143, %145, %cst_60 {dimension_numbers = #tpu.dot_dimension_numbers<[1], [0], [0], [1], [0, 0, 1, 1], [], []>} : vector<16x32xf32>, vector<32x64xf32>, vector<16x64xf32> -> vector<16x64xf32>
    %c0_61 = arith.constant 0 : index
    %c0_62 = arith.constant 0 : index
    %c0_63 = arith.constant 0 : index
    %147 = vector.load %arg11[%c0_61, %c0_62, %c0_63] : memref<2x1x64xf32, #tpu.memory_space<vmem>>, vector<1x1x64xf32>
    %148 = vector.shape_cast %147 : vector<1x1x64xf32> to vector<1x64xf32>
    %149 = vector.broadcast %148 : vector<1x64xf32> to vector<16x64xf32>
    %150 = arith.addf %146, %149 : vector<16x64xf32>
    %cst_64 = arith.constant 5.000000e-01 : f32
    %151 = vector.broadcast %cst_64 : f32 to vector<16x64xf32>
    %152 = arith.mulf %151, %150 : vector<16x64xf32>
    %cst_65 = arith.constant 4.471500e-02 : f32
    %153 = vector.broadcast %cst_65 : f32 to vector<16x64xf32>
    %154 = arith.mulf %153, %150 : vector<16x64xf32>
    %155 = arith.mulf %154, %150 : vector<16x64xf32>
    %156 = arith.mulf %155, %150 : vector<16x64xf32>
    %157 = arith.addf %150, %156 : vector<16x64xf32>
    %cst_66 = arith.constant 0.797884583 : f32
    %158 = vector.broadcast %cst_66 : f32 to vector<16x64xf32>
    %159 = arith.mulf %158, %157 : vector<16x64xf32>
    %160 = math.tanh %159 : vector<16x64xf32>
    %cst_67 = arith.constant 1.000000e+00 : f32
    %161 = vector.broadcast %cst_67 : f32 to vector<16x64xf32>
    %162 = arith.addf %161, %160 : vector<16x64xf32>
    %163 = arith.mulf %152, %162 : vector<16x64xf32>
    %c0_68 = arith.constant 0 : index
    %c0_69 = arith.constant 0 : index
    %c0_70 = arith.constant 0 : index
    %164 = vector.load %arg12[%c0_68, %c0_69, %c0_70] : memref<2x64x32xf32, #tpu.memory_space<vmem>>, vector<1x64x32xf32>
    %165 = vector.shape_cast %164 : vector<1x64x32xf32> to vector<64x32xf32>
    %cst_71 = arith.constant dense<0.000000e+00> : vector<16x32xf32>
    %166 = tpu.matmul %163, %165, %cst_71 {dimension_numbers = #tpu.dot_dimension_numbers<[1], [0], [0], [1], [0, 0, 1, 1], [], []>} : vector<16x64xf32>, vector<64x32xf32>, vector<16x32xf32> -> vector<16x32xf32>
    %c0_72 = arith.constant 0 : index
    %c0_73 = arith.constant 0 : index
    %c0_74 = arith.constant 0 : index
    %167 = vector.load %arg13[%c0_72, %c0_73, %c0_74] : memref<2x1x32xf32, #tpu.memory_space<vmem>>, vector<1x1x32xf32>
    %168 = vector.shape_cast %167 : vector<1x1x32xf32> to vector<1x32xf32>
    %169 = vector.broadcast %168 : vector<1x32xf32> to vector<16x32xf32>
    %170 = arith.addf %166, %169 : vector<16x32xf32>
    %171 = arith.addf %170, %143 : vector<16x32xf32>
    %c0_75 = arith.constant 0 : index
    %c0_76 = arith.constant 0 : index
    %c0_77 = arith.constant 0 : index
    %172 = vector.load %arg14[%c0_75, %c0_76, %c0_77] : memref<2x1x32xf32, #tpu.memory_space<vmem>>, vector<1x1x32xf32>
    %173 = vector.shape_cast %172 : vector<1x1x32xf32> to vector<1x32xf32>
    %c0_78 = arith.constant 0 : index
    %c0_79 = arith.constant 0 : index
    %c0_80 = arith.constant 0 : index
    %174 = vector.load %arg15[%c0_78, %c0_79, %c0_80] : memref<2x1x32xf32, #tpu.memory_space<vmem>>, vector<1x1x32xf32>
    %175 = vector.shape_cast %174 : vector<1x1x32xf32> to vector<1x32xf32>
    %cst_81 = arith.constant dense<0.000000e+00> : vector<16xf32>
    %176 = vector.multi_reduction <add>, %171, %cst_81 [1] : vector<16x32xf32> to vector<16xf32>
    %177 = vector.shape_cast %176 : vector<16xf32> to vector<16x1xf32>
    %cst_82 = arith.constant 3.200000e+01 : f32
    %178 = vector.broadcast %cst_82 : f32 to vector<16x1xf32>
    %179 = arith.divf %177, %178 : vector<16x1xf32>
    %180 = vector.broadcast %179 : vector<16x1xf32> to vector<16x32xf32>
    %181 = arith.subf %171, %180 : vector<16x32xf32>
    %182 = arith.mulf %181, %181 : vector<16x32xf32>
    %cst_83 = arith.constant dense<0.000000e+00> : vector<16xf32>
    %183 = vector.multi_reduction <add>, %182, %cst_83 [1] : vector<16x32xf32> to vector<16xf32>
    %184 = vector.shape_cast %183 : vector<16xf32> to vector<16x1xf32>
    %cst_84 = arith.constant 3.200000e+01 : f32
    %185 = vector.broadcast %cst_84 : f32 to vector<16x1xf32>
    %186 = arith.divf %184, %185 : vector<16x1xf32>
    %187 = vector.broadcast %179 : vector<16x1xf32> to vector<16x32xf32>
    %188 = arith.subf %171, %187 : vector<16x32xf32>
    %cst_85 = arith.constant 9.99999996E-13 : f32
    %189 = vector.broadcast %cst_85 : f32 to vector<16x1xf32>
    %190 = arith.addf %186, %189 : vector<16x1xf32>
    %191 = math.rsqrt %190 : vector<16x1xf32>
    %192 = vector.broadcast %191 : vector<16x1xf32> to vector<16x32xf32>
    %193 = arith.mulf %188, %192 : vector<16x32xf32>
    %194 = vector.broadcast %173 : vector<1x32xf32> to vector<16x32xf32>
    %195 = arith.mulf %193, %194 : vector<16x32xf32>
    %196 = vector.broadcast %175 : vector<1x32xf32> to vector<16x32xf32>
    %197 = arith.addf %195, %196 : vector<16x32xf32>
    %c1 = arith.constant 1 : index
    %c0_86 = arith.constant 0 : index
    %c0_87 = arith.constant 0 : index
    %198 = vector.load %arg4[%c1, %c0_86, %c0_87] : memref<2x32x96xf32, #tpu.memory_space<vmem>>, vector<1x32x96xf32>
    %199 = vector.shape_cast %198 : vector<1x32x96xf32> to vector<32x96xf32>
    %cst_88 = arith.constant dense<0.000000e+00> : vector<16x96xf32>
    %200 = tpu.matmul %197, %199, %cst_88 {dimension_numbers = #tpu.dot_dimension_numbers<[1], [0], [0], [1], [0, 0, 1, 1], [], []>} : vector<16x32xf32>, vector<32x96xf32>, vector<16x96xf32> -> vector<16x96xf32>
    %c1_89 = arith.constant 1 : index
    %c0_90 = arith.constant 0 : index
    %c0_91 = arith.constant 0 : index
    %201 = vector.load %arg5[%c1_89, %c0_90, %c0_91] : memref<2x1x96xf32, #tpu.memory_space<vmem>>, vector<1x1x96xf32>
    %202 = vector.shape_cast %201 : vector<1x1x96xf32> to vector<1x96xf32>
    %203 = vector.broadcast %202 : vector<1x96xf32> to vector<16x96xf32>
    %204 = arith.addf %200, %203 : vector<16x96xf32>
    %205 = vector.extract_strided_slice %204 {offsets = [0, 0], sizes = [16, 32], strides = [1, 1]} : vector<16x96xf32> to vector<16x32xf32>
    %cst_92 = arith.constant 0.353553385 : f32
    %206 = vector.broadcast %cst_92 : f32 to vector<16x32xf32>
    %207 = arith.mulf %205, %206 : vector<16x32xf32>
    %208 = vector.extract_strided_slice %204 {offsets = [0, 32], sizes = [16, 32], strides = [1, 1]} : vector<16x96xf32> to vector<16x32xf32>
    %209 = vector.extract_strided_slice %204 {offsets = [0, 64], sizes = [16, 32], strides = [1, 1]} : vector<16x96xf32> to vector<16x32xf32>
    %c1_93 = arith.constant 1 : index
    %c0_94 = arith.constant 0 : index
    %c0_95 = arith.constant 0 : index
    %210 = vector.load %arg6[%c1_93, %c0_94, %c0_95] : memref<2x32x32xf32, #tpu.memory_space<vmem>>, vector<1x32x32xf32>
    %211 = vector.shape_cast %210 : vector<1x32x32xf32> to vector<32x32xf32>
    %cst_96 = arith.constant 0.000000e+00 : f32
    %212 = vector.broadcast %cst_96 : f32 to vector<16x32xf32>
    %213 = vector.extract_strided_slice %207 {offsets = [0, 0], sizes = [16, 8], strides = [1, 1]} : vector<16x32xf32> to vector<16x8xf32>
    %214 = vector.extract_strided_slice %208 {offsets = [0, 0], sizes = [16, 8], strides = [1, 1]} : vector<16x32xf32> to vector<16x8xf32>
    %215 = vector.extract_strided_slice %209 {offsets = [0, 0], sizes = [16, 8], strides = [1, 1]} : vector<16x32xf32> to vector<16x8xf32>
    %cst_97 = arith.constant dense<0.000000e+00> : vector<16x16xf32>
    %216 = tpu.matmul %213, %214, %cst_97 {dimension_numbers = #tpu.dot_dimension_numbers<[1], [1], [0], [0], [0, 0, 1, 0], [], []>} : vector<16x8xf32>, vector<16x8xf32>, vector<16x16xf32> -> vector<16x16xf32>
    %217 = arith.addf %216, %25 : vector<16x16xf32>
    %cst_98 = arith.constant dense<0xFF800000> : vector<16xf32>
    %218 = vector.multi_reduction <maximumf>, %217, %cst_98 [1] : vector<16x16xf32> to vector<16xf32>
    %219 = vector.shape_cast %218 : vector<16xf32> to vector<16x1xf32>
    %220 = vector.broadcast %219 : vector<16x1xf32> to vector<16x16xf32>
    %221 = arith.subf %217, %220 : vector<16x16xf32>
    %222 = math.exp %221 : vector<16x16xf32>
    %cst_99 = arith.constant dense<0.000000e+00> : vector<16xf32>
    %223 = vector.multi_reduction <add>, %222, %cst_99 [1] : vector<16x16xf32> to vector<16xf32>
    %224 = vector.shape_cast %223 : vector<16xf32> to vector<16x1xf32>
    %225 = vector.broadcast %224 : vector<16x1xf32> to vector<16x16xf32>
    %226 = arith.divf %222, %225 : vector<16x16xf32>
    %cst_100 = arith.constant dense<0.000000e+00> : vector<16x8xf32>
    %227 = tpu.matmul %226, %215, %cst_100 {dimension_numbers = #tpu.dot_dimension_numbers<[1], [0], [0], [1], [0, 0, 1, 1], [], []>} : vector<16x16xf32>, vector<16x8xf32>, vector<16x8xf32> -> vector<16x8xf32>
    %228 = vector.extract_strided_slice %211 {offsets = [0, 0], sizes = [8, 32], strides = [1, 1]} : vector<32x32xf32> to vector<8x32xf32>
    %cst_101 = arith.constant dense<0.000000e+00> : vector<16x32xf32>
    %229 = tpu.matmul %227, %228, %cst_101 {dimension_numbers = #tpu.dot_dimension_numbers<[1], [0], [0], [1], [0, 0, 1, 1], [], []>} : vector<16x8xf32>, vector<8x32xf32>, vector<16x32xf32> -> vector<16x32xf32>
    %230 = arith.addf %212, %229 : vector<16x32xf32>
    %231 = vector.extract_strided_slice %207 {offsets = [0, 8], sizes = [16, 8], strides = [1, 1]} : vector<16x32xf32> to vector<16x8xf32>
    %232 = vector.extract_strided_slice %208 {offsets = [0, 8], sizes = [16, 8], strides = [1, 1]} : vector<16x32xf32> to vector<16x8xf32>
    %233 = vector.extract_strided_slice %209 {offsets = [0, 8], sizes = [16, 8], strides = [1, 1]} : vector<16x32xf32> to vector<16x8xf32>
    %cst_102 = arith.constant dense<0.000000e+00> : vector<16x16xf32>
    %234 = tpu.matmul %231, %232, %cst_102 {dimension_numbers = #tpu.dot_dimension_numbers<[1], [1], [0], [0], [0, 0, 1, 0], [], []>} : vector<16x8xf32>, vector<16x8xf32>, vector<16x16xf32> -> vector<16x16xf32>
    %235 = arith.addf %234, %25 : vector<16x16xf32>
    %cst_103 = arith.constant dense<0xFF800000> : vector<16xf32>
    %236 = vector.multi_reduction <maximumf>, %235, %cst_103 [1] : vector<16x16xf32> to vector<16xf32>
    %237 = vector.shape_cast %236 : vector<16xf32> to vector<16x1xf32>
    %238 = vector.broadcast %237 : vector<16x1xf32> to vector<16x16xf32>
    %239 = arith.subf %235, %238 : vector<16x16xf32>
    %240 = math.exp %239 : vector<16x16xf32>
    %cst_104 = arith.constant dense<0.000000e+00> : vector<16xf32>
    %241 = vector.multi_reduction <add>, %240, %cst_104 [1] : vector<16x16xf32> to vector<16xf32>
    %242 = vector.shape_cast %241 : vector<16xf32> to vector<16x1xf32>
    %243 = vector.broadcast %242 : vector<16x1xf32> to vector<16x16xf32>
    %244 = arith.divf %240, %243 : vector<16x16xf32>
    %cst_105 = arith.constant dense<0.000000e+00> : vector<16x8xf32>
    %245 = tpu.matmul %244, %233, %cst_105 {dimension_numbers = #tpu.dot_dimension_numbers<[1], [0], [0], [1], [0, 0, 1, 1], [], []>} : vector<16x16xf32>, vector<16x8xf32>, vector<16x8xf32> -> vector<16x8xf32>
    %246 = vector.extract_strided_slice %211 {offsets = [8, 0], sizes = [8, 32], strides = [1, 1]} : vector<32x32xf32> to vector<8x32xf32>
    %cst_106 = arith.constant dense<0.000000e+00> : vector<16x32xf32>
    %247 = tpu.matmul %245, %246, %cst_106 {dimension_numbers = #tpu.dot_dimension_numbers<[1], [0], [0], [1], [0, 0, 1, 1], [], []>} : vector<16x8xf32>, vector<8x32xf32>, vector<16x32xf32> -> vector<16x32xf32>
    %248 = arith.addf %230, %247 : vector<16x32xf32>
    %249 = vector.extract_strided_slice %207 {offsets = [0, 16], sizes = [16, 8], strides = [1, 1]} : vector<16x32xf32> to vector<16x8xf32>
    %250 = vector.extract_strided_slice %208 {offsets = [0, 16], sizes = [16, 8], strides = [1, 1]} : vector<16x32xf32> to vector<16x8xf32>
    %251 = vector.extract_strided_slice %209 {offsets = [0, 16], sizes = [16, 8], strides = [1, 1]} : vector<16x32xf32> to vector<16x8xf32>
    %cst_107 = arith.constant dense<0.000000e+00> : vector<16x16xf32>
    %252 = tpu.matmul %249, %250, %cst_107 {dimension_numbers = #tpu.dot_dimension_numbers<[1], [1], [0], [0], [0, 0, 1, 0], [], []>} : vector<16x8xf32>, vector<16x8xf32>, vector<16x16xf32> -> vector<16x16xf32>
    %253 = arith.addf %252, %25 : vector<16x16xf32>
    %cst_108 = arith.constant dense<0xFF800000> : vector<16xf32>
    %254 = vector.multi_reduction <maximumf>, %253, %cst_108 [1] : vector<16x16xf32> to vector<16xf32>
    %255 = vector.shape_cast %254 : vector<16xf32> to vector<16x1xf32>
    %256 = vector.broadcast %255 : vector<16x1xf32> to vector<16x16xf32>
    %257 = arith.subf %253, %256 : vector<16x16xf32>
    %258 = math.exp %257 : vector<16x16xf32>
    %cst_109 = arith.constant dense<0.000000e+00> : vector<16xf32>
    %259 = vector.multi_reduction <add>, %258, %cst_109 [1] : vector<16x16xf32> to vector<16xf32>
    %260 = vector.shape_cast %259 : vector<16xf32> to vector<16x1xf32>
    %261 = vector.broadcast %260 : vector<16x1xf32> to vector<16x16xf32>
    %262 = arith.divf %258, %261 : vector<16x16xf32>
    %cst_110 = arith.constant dense<0.000000e+00> : vector<16x8xf32>
    %263 = tpu.matmul %262, %251, %cst_110 {dimension_numbers = #tpu.dot_dimension_numbers<[1], [0], [0], [1], [0, 0, 1, 1], [], []>} : vector<16x16xf32>, vector<16x8xf32>, vector<16x8xf32> -> vector<16x8xf32>
    %264 = vector.extract_strided_slice %211 {offsets = [16, 0], sizes = [8, 32], strides = [1, 1]} : vector<32x32xf32> to vector<8x32xf32>
    %cst_111 = arith.constant dense<0.000000e+00> : vector<16x32xf32>
    %265 = tpu.matmul %263, %264, %cst_111 {dimension_numbers = #tpu.dot_dimension_numbers<[1], [0], [0], [1], [0, 0, 1, 1], [], []>} : vector<16x8xf32>, vector<8x32xf32>, vector<16x32xf32> -> vector<16x32xf32>
    %266 = arith.addf %248, %265 : vector<16x32xf32>
    %267 = vector.extract_strided_slice %207 {offsets = [0, 24], sizes = [16, 8], strides = [1, 1]} : vector<16x32xf32> to vector<16x8xf32>
    %268 = vector.extract_strided_slice %208 {offsets = [0, 24], sizes = [16, 8], strides = [1, 1]} : vector<16x32xf32> to vector<16x8xf32>
    %269 = vector.extract_strided_slice %209 {offsets = [0, 24], sizes = [16, 8], strides = [1, 1]} : vector<16x32xf32> to vector<16x8xf32>
    %cst_112 = arith.constant dense<0.000000e+00> : vector<16x16xf32>
    %270 = tpu.matmul %267, %268, %cst_112 {dimension_numbers = #tpu.dot_dimension_numbers<[1], [1], [0], [0], [0, 0, 1, 0], [], []>} : vector<16x8xf32>, vector<16x8xf32>, vector<16x16xf32> -> vector<16x16xf32>
    %271 = arith.addf %270, %25 : vector<16x16xf32>
    %cst_113 = arith.constant dense<0xFF800000> : vector<16xf32>
    %272 = vector.multi_reduction <maximumf>, %271, %cst_113 [1] : vector<16x16xf32> to vector<16xf32>
    %273 = vector.shape_cast %272 : vector<16xf32> to vector<16x1xf32>
    %274 = vector.broadcast %273 : vector<16x1xf32> to vector<16x16xf32>
    %275 = arith.subf %271, %274 : vector<16x16xf32>
    %276 = math.exp %275 : vector<16x16xf32>
    %cst_114 = arith.constant dense<0.000000e+00> : vector<16xf32>
    %277 = vector.multi_reduction <add>, %276, %cst_114 [1] : vector<16x16xf32> to vector<16xf32>
    %278 = vector.shape_cast %277 : vector<16xf32> to vector<16x1xf32>
    %279 = vector.broadcast %278 : vector<16x1xf32> to vector<16x16xf32>
    %280 = arith.divf %276, %279 : vector<16x16xf32>
    %cst_115 = arith.constant dense<0.000000e+00> : vector<16x8xf32>
    %281 = tpu.matmul %280, %269, %cst_115 {dimension_numbers = #tpu.dot_dimension_numbers<[1], [0], [0], [1], [0, 0, 1, 1], [], []>} : vector<16x16xf32>, vector<16x8xf32>, vector<16x8xf32> -> vector<16x8xf32>
    %282 = vector.extract_strided_slice %211 {offsets = [24, 0], sizes = [8, 32], strides = [1, 1]} : vector<32x32xf32> to vector<8x32xf32>
    %cst_116 = arith.constant dense<0.000000e+00> : vector<16x32xf32>
    %283 = tpu.matmul %281, %282, %cst_116 {dimension_numbers = #tpu.dot_dimension_numbers<[1], [0], [0], [1], [0, 0, 1, 1], [], []>} : vector<16x8xf32>, vector<8x32xf32>, vector<16x32xf32> -> vector<16x32xf32>
    %284 = arith.addf %266, %283 : vector<16x32xf32>
    %c1_117 = arith.constant 1 : index
    %c0_118 = arith.constant 0 : index
    %c0_119 = arith.constant 0 : index
    %285 = vector.load %arg7[%c1_117, %c0_118, %c0_119] : memref<2x1x32xf32, #tpu.memory_space<vmem>>, vector<1x1x32xf32>
    %286 = vector.shape_cast %285 : vector<1x1x32xf32> to vector<1x32xf32>
    %287 = vector.broadcast %286 : vector<1x32xf32> to vector<16x32xf32>
    %288 = arith.addf %284, %287 : vector<16x32xf32>
    %289 = arith.addf %288, %197 : vector<16x32xf32>
    %c1_120 = arith.constant 1 : index
    %c0_121 = arith.constant 0 : index
    %c0_122 = arith.constant 0 : index
    %290 = vector.load %arg8[%c1_120, %c0_121, %c0_122] : memref<2x1x32xf32, #tpu.memory_space<vmem>>, vector<1x1x32xf32>
    %291 = vector.shape_cast %290 : vector<1x1x32xf32> to vector<1x32xf32>
    %c1_123 = arith.constant 1 : index
    %c0_124 = arith.constant 0 : index
    %c0_125 = arith.constant 0 : index
    %292 = vector.load %arg9[%c1_123, %c0_124, %c0_125] : memref<2x1x32xf32, #tpu.memory_space<vmem>>, vector<1x1x32xf32>
    %293 = vector.shape_cast %292 : vector<1x1x32xf32> to vector<1x32xf32>
    %cst_126 = arith.constant dense<0.000000e+00> : vector<16xf32>
    %294 = vector.multi_reduction <add>, %289, %cst_126 [1] : vector<16x32xf32> to vector<16xf32>
    %295 = vector.shape_cast %294 : vector<16xf32> to vector<16x1xf32>
    %cst_127 = arith.constant 3.200000e+01 : f32
    %296 = vector.broadcast %cst_127 : f32 to vector<16x1xf32>
    %297 = arith.divf %295, %296 : vector<16x1xf32>
    %298 = vector.broadcast %297 : vector<16x1xf32> to vector<16x32xf32>
    %299 = arith.subf %289, %298 : vector<16x32xf32>
    %300 = arith.mulf %299, %299 : vector<16x32xf32>
    %cst_128 = arith.constant dense<0.000000e+00> : vector<16xf32>
    %301 = vector.multi_reduction <add>, %300, %cst_128 [1] : vector<16x32xf32> to vector<16xf32>
    %302 = vector.shape_cast %301 : vector<16xf32> to vector<16x1xf32>
    %cst_129 = arith.constant 3.200000e+01 : f32
    %303 = vector.broadcast %cst_129 : f32 to vector<16x1xf32>
    %304 = arith.divf %302, %303 : vector<16x1xf32>
    %305 = vector.broadcast %297 : vector<16x1xf32> to vector<16x32xf32>
    %306 = arith.subf %289, %305 : vector<16x32xf32>
    %cst_130 = arith.constant 9.99999996E-13 : f32
    %307 = vector.broadcast %cst_130 : f32 to vector<16x1xf32>
    %308 = arith.addf %304, %307 : vector<16x1xf32>
    %309 = math.rsqrt %308 : vector<16x1xf32>
    %310 = vector.broadcast %309 : vector<16x1xf32> to vector<16x32xf32>
    %311 = arith.mulf %306, %310 : vector<16x32xf32>
    %312 = vector.broadcast %291 : vector<1x32xf32> to vector<16x32xf32>
    %313 = arith.mulf %311, %312 : vector<16x32xf32>
    %314 = vector.broadcast %293 : vector<1x32xf32> to vector<16x32xf32>
    %315 = arith.addf %313, %314 : vector<16x32xf32>
    %c1_131 = arith.constant 1 : index
    %c0_132 = arith.constant 0 : index
    %c0_133 = arith.constant 0 : index
    %316 = vector.load %arg10[%c1_131, %c0_132, %c0_133] : memref<2x32x64xf32, #tpu.memory_space<vmem>>, vector<1x32x64xf32>
    %317 = vector.shape_cast %316 : vector<1x32x64xf32> to vector<32x64xf32>
    %cst_134 = arith.constant dense<0.000000e+00> : vector<16x64xf32>
    %318 = tpu.matmul %315, %317, %cst_134 {dimension_numbers = #tpu.dot_dimension_numbers<[1], [0], [0], [1], [0, 0, 1, 1], [], []>} : vector<16x32xf32>, vector<32x64xf32>, vector<16x64xf32> -> vector<16x64xf32>
    %c1_135 = arith.constant 1 : index
    %c0_136 = arith.constant 0 : index
    %c0_137 = arith.constant 0 : index
    %319 = vector.load %arg11[%c1_135, %c0_136, %c0_137] : memref<2x1x64xf32, #tpu.memory_space<vmem>>, vector<1x1x64xf32>
    %320 = vector.shape_cast %319 : vector<1x1x64xf32> to vector<1x64xf32>
    %321 = vector.broadcast %320 : vector<1x64xf32> to vector<16x64xf32>
    %322 = arith.addf %318, %321 : vector<16x64xf32>
    %cst_138 = arith.constant 5.000000e-01 : f32
    %323 = vector.broadcast %cst_138 : f32 to vector<16x64xf32>
    %324 = arith.mulf %323, %322 : vector<16x64xf32>
    %cst_139 = arith.constant 4.471500e-02 : f32
    %325 = vector.broadcast %cst_139 : f32 to vector<16x64xf32>
    %326 = arith.mulf %325, %322 : vector<16x64xf32>
    %327 = arith.mulf %326, %322 : vector<16x64xf32>
    %328 = arith.mulf %327, %322 : vector<16x64xf32>
    %329 = arith.addf %322, %328 : vector<16x64xf32>
    %cst_140 = arith.constant 0.797884583 : f32
    %330 = vector.broadcast %cst_140 : f32 to vector<16x64xf32>
    %331 = arith.mulf %330, %329 : vector<16x64xf32>
    %332 = math.tanh %331 : vector<16x64xf32>
    %cst_141 = arith.constant 1.000000e+00 : f32
    %333 = vector.broadcast %cst_141 : f32 to vector<16x64xf32>
    %334 = arith.addf %333, %332 : vector<16x64xf32>
    %335 = arith.mulf %324, %334 : vector<16x64xf32>
    %c1_142 = arith.constant 1 : index
    %c0_143 = arith.constant 0 : index
    %c0_144 = arith.constant 0 : index
    %336 = vector.load %arg12[%c1_142, %c0_143, %c0_144] : memref<2x64x32xf32, #tpu.memory_space<vmem>>, vector<1x64x32xf32>
    %337 = vector.shape_cast %336 : vector<1x64x32xf32> to vector<64x32xf32>
    %cst_145 = arith.constant dense<0.000000e+00> : vector<16x32xf32>
    %338 = tpu.matmul %335, %337, %cst_145 {dimension_numbers = #tpu.dot_dimension_numbers<[1], [0], [0], [1], [0, 0, 1, 1], [], []>} : vector<16x64xf32>, vector<64x32xf32>, vector<16x32xf32> -> vector<16x32xf32>
    %c1_146 = arith.constant 1 : index
    %c0_147 = arith.constant 0 : index
    %c0_148 = arith.constant 0 : index
    %339 = vector.load %arg13[%c1_146, %c0_147, %c0_148] : memref<2x1x32xf32, #tpu.memory_space<vmem>>, vector<1x1x32xf32>
    %340 = vector.shape_cast %339 : vector<1x1x32xf32> to vector<1x32xf32>
    %341 = vector.broadcast %340 : vector<1x32xf32> to vector<16x32xf32>
    %342 = arith.addf %338, %341 : vector<16x32xf32>
    %343 = arith.addf %342, %315 : vector<16x32xf32>
    %c1_149 = arith.constant 1 : index
    %c0_150 = arith.constant 0 : index
    %c0_151 = arith.constant 0 : index
    %344 = vector.load %arg14[%c1_149, %c0_150, %c0_151] : memref<2x1x32xf32, #tpu.memory_space<vmem>>, vector<1x1x32xf32>
    %345 = vector.shape_cast %344 : vector<1x1x32xf32> to vector<1x32xf32>
    %c1_152 = arith.constant 1 : index
    %c0_153 = arith.constant 0 : index
    %c0_154 = arith.constant 0 : index
    %346 = vector.load %arg15[%c1_152, %c0_153, %c0_154] : memref<2x1x32xf32, #tpu.memory_space<vmem>>, vector<1x1x32xf32>
    %347 = vector.shape_cast %346 : vector<1x1x32xf32> to vector<1x32xf32>
    %cst_155 = arith.constant dense<0.000000e+00> : vector<16xf32>
    %348 = vector.multi_reduction <add>, %343, %cst_155 [1] : vector<16x32xf32> to vector<16xf32>
    %349 = vector.shape_cast %348 : vector<16xf32> to vector<16x1xf32>
    %cst_156 = arith.constant 3.200000e+01 : f32
    %350 = vector.broadcast %cst_156 : f32 to vector<16x1xf32>
    %351 = arith.divf %349, %350 : vector<16x1xf32>
    %352 = vector.broadcast %351 : vector<16x1xf32> to vector<16x32xf32>
    %353 = arith.subf %343, %352 : vector<16x32xf32>
    %354 = arith.mulf %353, %353 : vector<16x32xf32>
    %cst_157 = arith.constant dense<0.000000e+00> : vector<16xf32>
    %355 = vector.multi_reduction <add>, %354, %cst_157 [1] : vector<16x32xf32> to vector<16xf32>
    %356 = vector.shape_cast %355 : vector<16xf32> to vector<16x1xf32>
    %cst_158 = arith.constant 3.200000e+01 : f32
    %357 = vector.broadcast %cst_158 : f32 to vector<16x1xf32>
    %358 = arith.divf %356, %357 : vector<16x1xf32>
    %359 = vector.broadcast %351 : vector<16x1xf32> to vector<16x32xf32>
    %360 = arith.subf %343, %359 : vector<16x32xf32>
    %cst_159 = arith.constant 9.99999996E-13 : f32
    %361 = vector.broadcast %cst_159 : f32 to vector<16x1xf32>
    %362 = arith.addf %358, %361 : vector<16x1xf32>
    %363 = math.rsqrt %362 : vector<16x1xf32>
    %364 = vector.broadcast %363 : vector<16x1xf32> to vector<16x32xf32>
    %365 = arith.mulf %360, %364 : vector<16x32xf32>
    %366 = vector.broadcast %345 : vector<1x32xf32> to vector<16x32xf32>
    %367 = arith.mulf %365, %366 : vector<16x32xf32>
    %368 = vector.broadcast %347 : vector<1x32xf32> to vector<16x32xf32>
    %369 = arith.addf %367, %368 : vector<16x32xf32>
    %370 = vector.extract_strided_slice %369 {offsets = [0, 0], sizes = [1, 32], strides = [1, 1]} : vector<16x32xf32> to vector<1x32xf32>
    %371 = vector.extract_strided_slice %369 {offsets = [8, 0], sizes = [1, 32], strides = [1, 1]} : vector<16x32xf32> to vector<1x32xf32>
    %372 = tpu.concatenate %370, %371 in 0 : vector<1x32xf32>, vector<1x32xf32> -> vector<2x32xf32>
    %c0_160 = arith.constant 0 : index
    %c0_161 = arith.constant 0 : index
    %373 = vector.load %arg16[%c0_160, %c0_161] : memref<32x32xf32, #tpu.memory_space<vmem>>, vector<32x32xf32>
    %cst_162 = arith.constant dense<0.000000e+00> : vector<2x32xf32>
    %374 = tpu.matmul %372, %373, %cst_162 {dimension_numbers = #tpu.dot_dimension_numbers<[1], [0], [0], [1], [0, 0, 1, 1], [], []>} : vector<2x32xf32>, vector<32x32xf32>, vector<2x32xf32> -> vector<2x32xf32>
    %c0_163 = arith.constant 0 : index
    %c0_164 = arith.constant 0 : index
    %375 = vector.load %arg17[%c0_163, %c0_164] : memref<1x32xf32, #tpu.memory_space<vmem>>, vector<1x32xf32>
    %376 = vector.broadcast %375 : vector<1x32xf32> to vector<2x32xf32>
    %377 = arith.addf %374, %376 : vector<2x32xf32>
    %378 = math.tanh %377 : vector<2x32xf32>
    %c0_165 = arith.constant 0 : index
    %c0_166 = arith.constant 0 : index
    %379 = vector.load %arg18[%c0_165, %c0_166] : memref<32x2xf32, #tpu.memory_space<vmem>>, vector<32x2xf32>
    %cst_167 = arith.constant dense<0.000000e+00> : vector<2x2xf32>
    %380 = tpu.matmul %378, %379, %cst_167 {dimension_numbers = #tpu.dot_dimension_numbers<[1], [0], [0], [1], [0, 0, 1, 1], [], []>} : vector<2x32xf32>, vector<32x2xf32>, vector<2x2xf32> -> vector<2x2xf32>
    %c0_168 = arith.constant 0 : index
    %c0_169 = arith.constant 0 : index
    %381 = vector.load %arg19[%c0_168, %c0_169] : memref<1x2xf32, #tpu.memory_space<vmem>>, vector<1x2xf32>
    %382 = vector.broadcast %381 : vector<1x2xf32> to vector<2x2xf32>
    %383 = arith.addf %380, %382 : vector<2x2xf32>
    %c0_170 = arith.constant 0 : index
    %c0_171 = arith.constant 0 : index
    %384 = vector.load %arg20[%c0_170, %c0_171] : memref<2x2xf32, #tpu.memory_space<vmem>>, vector<2x2xf32>
    tpu.vector_store %arg20[%c0_170, %c0_171], %383 {strides = array<i32>} : memref<2x2xf32, #tpu.memory_space<vmem>>, vector<2x2xf32>,
    return
  }
}

</mosaic_0001>

<llo_original>
// kernel: mul.10
$region0: #{mul.10}
  %s0 = inlined_call_operand.vmem [shape: f32[2,8], index: 0, kind: input, shape index: {}]
  %s1 = inlined_call_operand.vmem [shape: f32[16], index: 1, kind: output, shape index: {}]
  $region1: #{mul.10} parent=0
    #allocation0 [shape = 'u8[4096]{0}', space=vmem, size = 0x1000, scoped, tag = 'scoped mem for output reshape']
    #allocation1 [shape = 'u8[4096]{0}', space=vmem, size = 0x1000, scoped, tag = 'scoped mem for input reshape']
    %s3 = ssub.s32 4, 1
    %v4 = vld [vmem:[%s0] sm:%s3]
    %5 = vst [vmem:[#allocation1] sm:%s3] %v4
    %v6 = vld [vmem:[#allocation1] sm:$0x1]
    %vm7 = vcmask 64512
    %8 = vst.msk [vmem:[#allocation0] sm:$0x1] %vm7, %v6
    %s9 = scalar_lea.vmem [#allocation1], 1
    %v10 = vld [vmem:[%s9] sm:$0x1]
    %11 = vrot.lane.b32.xlu0 %v10, 8
    %v12 = vpop.permute.xlu0 %11
    %vm13 = vcmask 130112
    %14 = vst.msk [vmem:[#allocation0] sm:$0x1] %vm13, %v12
    %s16 = ssub.s32 2, 1
    %v17 = vld [vmem:[#allocation0] sm:%s16]
    %s19 = ssub.s32 2, 1
    %20 = vst [vmem:[%s1] sm:%s19] %v17

// kernel: bert_sst2_forward.1
$region0: #{bert_sst2_forward.1}
  #allocation0 [shape = 'u32[]', space=smem, size = 0x4, offset = 0x4, fixed_abs, tag = 'smem constant byte address 0x4 - core index']
  #allocation1 [shape = 'u32[72,128]{1,0:T(1,128)}', space=vmem, size = 0x9000, scoped, tag = 'internal scratch']
  %s0 = inlined_call_operand.vmem [shape: f32[16,32], index: 0, kind: input, shape index: {}]
  %s1 = inlined_call_operand.vmem [shape: f32[16,16], index: 1, kind: input, shape index: {}]
  %s2 = inlined_call_operand.vmem [shape: f32[1,32], index: 2, kind: input, shape index: {}]
  %s3 = inlined_call_operand.vmem [shape: f32[1,32], index: 3, kind: input, shape index: {}, may-alias: {3,17}]
  %s4 = inlined_call_operand.vmem [shape: f32[2,32,96], index: 4, kind: input, shape index: {}]
  %s5 = inlined_call_operand.vmem [shape: f32[2,1,96], index: 5, kind: input, shape index: {}]
  %s6 = inlined_call_operand.vmem [shape: f32[2,32,32], index: 6, kind: input, shape index: {}]
  %s7 = inlined_call_operand.vmem [shape: f32[2,1,32], index: 7, kind: input, shape index: {}, may-alias: {7,9,13,15}]
  %s8 = inlined_call_operand.vmem [shape: f32[2,1,32], index: 8, kind: input, shape index: {}, may-alias: {8,14}]
  %s9 = inlined_call_operand.vmem [shape: f32[2,1,32], index: 9, kind: input, shape index: {}, may-alias: {7,9,13,15}]
  %s10 = inlined_call_operand.vmem [shape: f32[2,32,64], index: 10, kind: input, shape index: {}]
  %s11 = inlined_call_operand.vmem [shape: f32[2,1,64], index: 11, kind: input, shape index: {}]
  %s12 = inlined_call_operand.vmem [shape: f32[2,64,32], index: 12, kind: input, shape index: {}]
  %s13 = inlined_call_operand.vmem [shape: f32[2,1,32], index: 13, kind: input, shape index: {}, may-alias: {7,9,13,15}]
  %s14 = inlined_call_operand.vmem [shape: f32[2,1,32], index: 14, kind: input, shape index: {}, may-alias: {8,14}]
  %s15 = inlined_call_operand.vmem [shape: f32[2,1,32], index: 15, kind: input, shape index: {}, may-alias: {7,9,13,15}]
  %s16 = inlined_call_operand.vmem [shape: f32[32,32], index: 16, kind: input, shape index: {}]
  %s17 = inlined_call_operand.vmem [shape: f32[1,32], index: 17, kind: input, shape index: {}, may-alias: {3,17}]
  %s18 = inlined_call_operand.vmem [shape: f32[32,2], index: 18, kind: input, shape index: {}]
  %s19 = inlined_call_operand.vmem [shape: f32[1,2], index: 19, kind: input, shape index: {}]
  %s20 = inlined_call_operand.hbm [shape: f32[2,2], index: 20, kind: output, shape index: {}]
  %s21 = sld [smem:[#allocation0]]
  $region90: #{bert_sst2_forward.1} parent=0
    _
  %s23 = ssub.s32 1, %s21
  %s24 = scalar_select 0, %s23, %s21
  $region1: #{bert_sst2_forward.1} parent=0
    #allocation2 [shape = 'u8[1024]{0}', space=vmem, size = 0x400, scoped, tag = 'output window, operand 0, single buffered']
    #allocation3 [shape = 's32[1]{0}', space=sflag, size = 0x4, scoped, tag = 'scoped memory for bert_sst2_forward.1']
    %25 = vsyncpa [#allocation3], 0
    // Predicated region
    $region2: #{bert_sst2_forward.1} parent=1 // pred_check
      _
    $region3: #{bert_sst2_forward.1} parent=1 // pred_check_branch
      %27 = sbr.rel (0) target = $region5
    $region4: #{bert_sst2_forward.1} parent=1 // pred_region
      _
    $region5: #{bert_sst2_forward.1} parent=1 // pred_fallthru
      _
    // Predicated region
    $region6: #{bert_sst2_forward.1} parent=1 // pred_check
      _
    $region7: #{bert_sst2_forward.1} parent=1 // pred_check_branch
      %29 = sbr.rel (0) target = $region9
    $region8: #{bert_sst2_forward.1} parent=1 // pred_region
      _
    $region9: #{bert_sst2_forward.1} parent=1 // pred_fallthru
      _
    // Predicated region
    $region10: #{bert_sst2_forward.1} parent=1 // pred_check
      _
    $region11: #{bert_sst2_forward.1} parent=1 // pred_check_branch
      %31 = sbr.rel (0) target = $region13
    $region12: #{bert_sst2_forward.1} parent=1 // pred_region
      _
    $region13: #{bert_sst2_forward.1} parent=1 // pred_fallthru
      _
    // Predicated region
    $region14: #{bert_sst2_forward.1} parent=1 // pred_check
      _
    $region15: #{bert_sst2_forward.1} parent=1 // pred_check_branch
      %33 = sbr.rel (0) target = $region17
    $region16: #{bert_sst2_forward.1} parent=1 // pred_region
      _
    $region17: #{bert_sst2_forward.1} parent=1 // pred_fallthru
      _
    // Predicated region
    $region18: #{bert_sst2_forward.1} parent=1 // pred_check
      _
    $region19: #{bert_sst2_forward.1} parent=1 // pred_check_branch
      %35 = sbr.rel (0) target = $region21
    $region20: #{bert_sst2_forward.1} parent=1 // pred_region
      _
    $region21: #{bert_sst2_forward.1} parent=1 // pred_fallthru
      _
    // Predicated region
    $region22: #{bert_sst2_forward.1} parent=1 // pred_check
      _
    $region23: #{bert_sst2_forward.1} parent=1 // pred_check_branch
      %37 = sbr.rel (0) target = $region25
    $region24: #{bert_sst2_forward.1} parent=1 // pred_region
      _
    $region25: #{bert_sst2_forward.1} parent=1 // pred_fallthru
      _
    // Predicated region
    $region26: #{bert_sst2_forward.1} parent=1 // pred_check
      _
    $region27: #{bert_sst2_forward.1} parent=1 // pred_check_branch
      %39 = sbr.rel (0) target = $region29
    $region28: #{bert_sst2_forward.1} parent=1 // pred_region
      _
    $region29: #{bert_sst2_forward.1} parent=1 // pred_fallthru
      _
    // Predicated region
    $region30: #{bert_sst2_forward.1} parent=1 // pred_check
      _
    $region31: #{bert_sst2_forward.1} parent=1 // pred_check_branch
      %41 = sbr.rel (0) target = $region33
    $region32: #{bert_sst2_forward.1} parent=1 // pred_region
      _
    $region33: #{bert_sst2_forward.1} parent=1 // pred_fallthru
      _
    // Predicated region
    $region34: #{bert_sst2_forward.1} parent=1 // pred_check
      _
    $region35: #{bert_sst2_forward.1} parent=1 // pred_check_branch
      %43 = sbr.rel (0) target = $region37
    $region36: #{bert_sst2_forward.1} parent=1 // pred_region
      _
    $region37: #{bert_sst2_forward.1} parent=1 // pred_fallthru
      _
    // Predicated region
    $region38: #{bert_sst2_forward.1} parent=1 // pred_check
      _
    $region39: #{bert_sst2_forward.1} parent=1 // pred_check_branch
      %45 = sbr.rel (0) target = $region41
    $region40: #{bert_sst2_forward.1} parent=1 // pred_region
      _
    $region41: #{bert_sst2_forward.1} parent=1 // pred_fallthru
      _
    // Predicated region
    $region42: #{bert_sst2_forward.1} parent=1 // pred_check
      _
    $region43: #{bert_sst2_forward.1} parent=1 // pred_check_branch
      %47 = sbr.rel (0) target = $region45
    $region44: #{bert_sst2_forward.1} parent=1 // pred_region
      _
    $region45: #{bert_sst2_forward.1} parent=1 // pred_fallthru
      _
    // Predicated region
    $region46: #{bert_sst2_forward.1} parent=1 // pred_check
      _
    $region47: #{bert_sst2_forward.1} parent=1 // pred_check_branch
      %49 = sbr.rel (0) target = $region49
    $region48: #{bert_sst2_forward.1} parent=1 // pred_region
      _
    $region49: #{bert_sst2_forward.1} parent=1 // pred_fallthru
      _
    // Predicated region
    $region50: #{bert_sst2_forward.1} parent=1 // pred_check
      _
    $region51: #{bert_sst2_forward.1} parent=1 // pred_check_branch
      %51 = sbr.rel (0) target = $region53
    $region52: #{bert_sst2_forward.1} parent=1 // pred_region
      _
    $region53: #{bert_sst2_forward.1} parent=1 // pred_fallthru
      _
    // Predicated region
    $region54: #{bert_sst2_forward.1} parent=1 // pred_check
      _
    $region55: #{bert_sst2_forward.1} parent=1 // pred_check_branch
      %53 = sbr.rel (0) target = $region57
    $region56: #{bert_sst2_forward.1} parent=1 // pred_region
      _
    $region57: #{bert_sst2_forward.1} parent=1 // pred_fallthru
      _
    // Predicated region
    $region58: #{bert_sst2_forward.1} parent=1 // pred_check
      _
    $region59: #{bert_sst2_forward.1} parent=1 // pred_check_branch
      %55 = sbr.rel (0) target = $region61
    $region60: #{bert_sst2_forward.1} parent=1 // pred_region
      _
    $region61: #{bert_sst2_forward.1} parent=1 // pred_fallthru
      _
    // Predicated region
    $region62: #{bert_sst2_forward.1} parent=1 // pred_check
      _
    $region63: #{bert_sst2_forward.1} parent=1 // pred_check_branch
      %57 = sbr.rel (0) target = $region65
    $region64: #{bert_sst2_forward.1} parent=1 // pred_region
      _
    $region65: #{bert_sst2_forward.1} parent=1 // pred_fallthru
      _
    // Predicated region
    $region66: #{bert_sst2_forward.1} parent=1 // pred_check
      _
    $region67: #{bert_sst2_forward.1} parent=1 // pred_check_branch
      %59 = sbr.rel (0) target = $region69
    $region68: #{bert_sst2_forward.1} parent=1 // pred_region
      _
    $region69: #{bert_sst2_forward.1} parent=1 // pred_fallthru
      _
    // Predicated region
    $region70: #{bert_sst2_forward.1} parent=1 // pred_check
      _
    $region71: #{bert_sst2_forward.1} parent=1 // pred_check_branch
      %61 = sbr.rel (0) target = $region73
    $region72: #{bert_sst2_forward.1} parent=1 // pred_region
      _
    $region73: #{bert_sst2_forward.1} parent=1 // pred_fallthru
      _
    // Predicated region
    $region74: #{bert_sst2_forward.1} parent=1 // pred_check
      _
    $region75: #{bert_sst2_forward.1} parent=1 // pred_check_branch
      %63 = sbr.rel (0) target = $region77
    $region76: #{bert_sst2_forward.1} parent=1 // pred_region
      _
    $region77: #{bert_sst2_forward.1} parent=1 // pred_fallthru
      _
    // Predicated region
    $region78: #{bert_sst2_forward.1} parent=1 // pred_check
      _
    $region79: #{bert_sst2_forward.1} parent=1 // pred_check_branch
      %65 = sbr.rel (0) target = $region81
    $region80: #{bert_sst2_forward.1} parent=1 // pred_region
      _
    $region81: #{bert_sst2_forward.1} parent=1 // pred_fallthru
      _
    %v66 = vld [vmem:[%s0] sm:$0xff]
    %v67 = vld [vmem:[%s0 + $0x8] sm:$0xff]
    %v68 = vld [vmem:[%s2] sm:$0x1]
    %v69 = vld [vmem:[%s3] sm:$0x1]
    %vm70 = vcmask 261120
    %v71 = vsel %vm70, %v66, 0.0
    %72 = vadd.xlane.f32.xlu0 %v71
    %v73 = vpop.xlane.xlu0 %72
    %v74 = vsel %vm70, %v67, 0.0
    %75 = vadd.xlane.f32.xlu0 %v74
    %v76 = vpop.xlane.xlu0 %75
    %v77 = vrcp.pop 32.0
    %v78 = vmul.f32 32.0, %v77
    %v79 = vsub.f32 1.0, %v78
    %v80 = vmul.f32 %v77, %v79
    %v81 = vadd.f32 %v77, %v80
    %vm82 = vweird.f32 %v77
    %v83 = vsel %vm82, %v77, %v81
    %v84 = vmul.f32 %v73, %v83
    %v85 = vmul.f32 %v76, %v83
    %v86 = vsub.f32 %v66, %v84
    %v87 = vsub.f32 %v67, %v85
    %v88 = vmul.f32 %v86, %v86
    %v89 = vmul.f32 %v87, %v87
    %v90 = vsel %vm70, %v88, 0.0
    %91 = vadd.xlane.f32.xlu0 %v90
    %v92 = vpop.xlane.xlu0 %91
    %v93 = vsel %vm70, %v89, 0.0
    %94 = vadd.xlane.f32.xlu0 %v93
    %v95 = vpop.xlane.xlu0 %94
    %v96 = vmul.f32 %v92, %v83
    %v97 = vmul.f32 %v95, %v83
    %v98 = vadd.f32 %v96, 1e-12
    %v99 = vadd.f32 %v97, 1e-12
    %v100 = vrsqrt.pop %v98
    %v101 = vmul.f32 %v100, %v98
    %v102 = vmul.f32 %v101, %v100
    %v103 = vmul.f32 0.5, %v102
    %v104 = vsub.f32 1.5, %v103
    %v105 = vmul.f32 %v100, %v104
    %vm106 = vweird.f32 %v98
    %vm107 = vweird.f32 %v100
    %vm108 = vmor %vm106, %vm107
    %v109 = vsel %vm108, %v100, %v105
    %v110 = vrsqrt.pop %v99
    %v111 = vmul.f32 %v110, %v99
    %v112 = vmul.f32 %v111, %v110
    %v113 = vmul.f32 0.5, %v112
    %v114 = vsub.f32 1.5, %v113
    %v115 = vmul.f32 %v110, %v114
    %vm116 = vweird.f32 %v99
    %vm117 = vweird.f32 %v110
    %vm118 = vmor %vm116, %vm117
    %v119 = vsel %vm118, %v110, %v115
    %v120 = vmul.f32 %v86, %v109
    %v121 = vmul.f32 %v87, %v119
    %v123 = vperm.slane %v68, 0
    %v125 = vmul.f32 %v120, %v123
    %v126 = vmul.f32 %v121, %v123
    %v128 = vperm.slane %v69, 0
    %v130 = vadd.f32 %v125, %v128
    %v131 = vadd.f32 %v126, %v128
    %v132 = vld [vmem:[%s1] sm:$0xff]
    %v133 = vld [vmem:[%s1 + $0x8] sm:$0xff]
    %v134 = vld [vmem:[%s4] sm:$0xff]
    %v135 = vld [vmem:[%s4 + $0x8] sm:$0xff]
    %v136 = vld [vmem:[%s4 + $0x10] sm:$0xff]
    %v137 = vld [vmem:[%s4 + $0x18] sm:$0xff]
    %v138 = vld [vmem:[%s5] sm:$0x1]
    %v140 = vperm.slane %v138, 0
    %v143 = vsel %vm70, %v130, 0
    %v146 = vsel %vm70, %v131, 0
    %148 = vmatpush.msra.mxu0 0.0
    %149 = vmatpush.msra.mxu0 0.0
    %150 = vmatpush.msra.mxu0 0.0
    %151 = vmatpush.msra.mxu0 0.0
    %152 = vmatpush.msra.mxu0 0.0
    %153 = vmatpush.msra.mxu0 0.0
    %154 = vmatpush.msra.mxu0 0.0
    %155 = vmatpush.msra.mxu0 0.0
    %156 = vmatpush.msra.mxu0 0.0
    %157 = vmatpush.msra.mxu0 0.0
    %158 = vmatpush.msra.mxu0 0.0
    %159 = vmatpush.msra.mxu0 0.0
    %160 = vmatpush.msra.mxu0 %v137
    %161 = vmatpush.msra.mxu0 %v136
    %162 = vmatpush.msra.mxu0 %v135
    %163 = vmatpush.msra.mxu0 %v134
    %164 = vmatmul.f32.gmra.mxu0 %v143
    %v165 = vpop.f32.mrf.mxu0
    %v166 = vadd.f32 %v140, %v165
    %167 = vmatmul.f32.gmra.mxu0 %v146
    %v168 = vpop.f32.mrf.mxu0
    %v169 = vadd.f32 %v140, %v168
    %170 = vdwg.mxu0
    %v171 = vmul.f32 %v166, 0.35355338
    %v172 = vmul.f32 %v169, 0.35355338
    %v173 = vld [vmem:[%s6] sm:$0xff]
    %v174 = vld [vmem:[%s6 + $0x8] sm:$0xff]
    %v175 = vld [vmem:[%s6 + $0x10] sm:$0xff]
    %v176 = vld [vmem:[%s6 + $0x18] sm:$0xff]
    %179 = vrot.lane.b32.xlu0 %v166, 96
    %v180 = vpop.permute.xlu0 %179
    %181 = vrot.lane.b32.xlu0 %v169, 96
    %v182 = vpop.permute.xlu0 %181
    %vm183 = vcmask 64512
    %v185 = vsel %vm183, %v171, 0
    %v188 = vsel %vm183, %v172, 0
    %v190 = vsel %vm183, %v180, 0
    %v192 = vsel %vm183, %v182, 0
    %194 = vmatpush.xpose.msra.mxu0 0.0
    %195 = vmatpush.xpose.msra.mxu0 0.0
    %196 = vmatpush.xpose.msra.mxu0 0.0
    %197 = vmatpush.xpose.msra.mxu0 0.0
    %198 = vmatpush.xpose.msra.mxu0 0.0
    %199 = vmatpush.xpose.msra.mxu0 0.0
    %200 = vmatpush.xpose.msra.mxu0 0.0
    %201 = vmatpush.xpose.msra.mxu0 0.0
    %202 = vmatpush.xpose.msra.mxu0 0.0
    %203 = vmatpush.xpose.msra.mxu0 0.0
    %204 = vmatpush.xpose.msra.mxu0 0.0
    %205 = vmatpush.xpose.msra.mxu0 0.0
    %206 = vmatpush.xpose.msra.mxu0 0.0
    %207 = vmatpush.xpose.msra.mxu0 0.0
    %208 = vmatpush.xpose.msra.mxu0 %v192
    %209 = vmatpush.xpose.msra.mxu0 %v190
    %210 = vmatmul.f32.gmra.mxu0 %v185
    %v211 = vpop.f32.mrf.mxu0
    %v212 = vadd.f32 %v132, %v211
    %213 = vmatmul.f32.gmra.mxu0 %v188
    %v214 = vpop.f32.mrf.mxu0
    %v215 = vadd.f32 %v133, %v214
    %216 = vdwg.mxu0
    %vm217 = vcmask 130048
    %v218 = vsel %vm217, %v212, -inf
    %219 = vmax.xlane.f32.xlu0 %v218
    %v220 = vpop.xlane.xlu0 %219
    %v221 = vsel %vm217, %v215, -inf
    %222 = vmax.xlane.f32.xlu0 %v221
    %v223 = vpop.xlane.xlu0 %222
    %v224 = vsub.f32 %v212, %v220
    %v225 = vsub.f32 %v215, %v223
    %v226 = vmul.f32 %v224, 1.442695
    %v227 = vpow.pop %v226
    %v228 = vmul.f32 %v225, 1.442695
    %v229 = vpow.pop %v228
    %v230 = vsel %vm217, %v227, 0.0
    %231 = vadd.xlane.f32.xlu0 %v230
    %v232 = vpop.xlane.xlu0 %231
    %v233 = vsel %vm217, %v229, 0.0
    %234 = vadd.xlane.f32.xlu0 %v233
    %v235 = vpop.xlane.xlu0 %234
    %v236 = vrcp.pop %v232
    %v237 = vmul.f32 %v232, %v236
    %v238 = vsub.f32 1.0, %v237
    %v239 = vmul.f32 %v236, %v238
    %v240 = vadd.f32 %v236, %v239
    %vm241 = vweird.f32 %v232
    %vm242 = vweird.f32 %v236
    %vm243 = vmor %vm241, %vm242
    %v244 = vsel %vm243, %v236, %v240
    %v245 = vand.u32 2147483647, %v232
    %vm246 = vcmp.eq.f32.partialorder %v245, 8.507059e+37
    %v247 = vand.u32 %v232, 2147483648
    %v248 = vor.u32 1.1754944e-38, %v247
    %v249 = vsel %vm246, %v248, %v244
    %v250 = vmul.f32 %v227, %v249
    %v251 = vrcp.pop %v235
    %v252 = vmul.f32 %v235, %v251
    %v253 = vsub.f32 1.0, %v252
    %v254 = vmul.f32 %v251, %v253
    %v255 = vadd.f32 %v251, %v254
    %vm256 = vweird.f32 %v235
    %vm257 = vweird.f32 %v251
    %vm258 = vmor %vm256, %vm257
    %v259 = vsel %vm258, %v251, %v255
    %v260 = vand.u32 2147483647, %v235
    %vm261 = vcmp.eq.f32.partialorder %v260, 8.507059e+37
    %v262 = vand.u32 %v235, 2147483648
    %v263 = vor.u32 1.1754944e-38, %v262
    %v264 = vsel %vm261, %v263, %v259
    %v265 = vmul.f32 %v229, %v264
    %266 = vrot.lane.b32.xlu0 %v166, 64
    %v267 = vpop.permute.xlu0 %266
    %268 = vrot.lane.b32.xlu0 %v169, 64
    %v269 = vpop.permute.xlu0 %268
    %v273 = vsel %vm217, %v250, 0
    %v276 = vsel %vm217, %v265, 0
    %278 = vmatpush.msra.mxu0 0.0
    %279 = vmatpush.msra.mxu0 0.0
    %280 = vmatpush.msra.mxu0 0.0
    %281 = vmatpush.msra.mxu0 0.0
    %282 = vmatpush.msra.mxu0 0.0
    %283 = vmatpush.msra.mxu0 0.0
    %284 = vmatpush.msra.mxu0 0.0
    %285 = vmatpush.msra.mxu0 0.0
    %286 = vmatpush.msra.mxu0 0.0
    %287 = vmatpush.msra.mxu0 0.0
    %288 = vmatpush.msra.mxu0 0.0
    %289 = vmatpush.msra.mxu0 0.0
    %290 = vmatpush.msra.mxu0 0.0
    %291 = vmatpush.msra.mxu0 0.0
    %292 = vmatpush.msra.mxu0 %v269
    %293 = vmatpush.msra.mxu0 %v267
    %294 = vmatmul.f32.gmra.mxu0 %v273
    %v295 = vpop.f32.mrf.mxu0
    %v296 = vadd.f32 0.0, %v295
    %297 = vmatmul.f32.gmra.mxu0 %v276
    %v298 = vpop.f32.mrf.mxu0
    %v299 = vadd.f32 0.0, %v298
    %300 = vdwg.mxu0
    %301 = vrot.lane.b32.xlu0 %v171, 120
    %v302 = vpop.permute.xlu0 %301
    %303 = vrot.lane.b32.xlu0 %v172, 120
    %v304 = vpop.permute.xlu0 %303
    %305 = vrot.lane.b32.xlu0 %v166, 88
    %v306 = vpop.permute.xlu0 %305
    %307 = vrot.lane.b32.xlu0 %v169, 88
    %v308 = vpop.permute.xlu0 %307
    %v309 = vsel %vm183, %v302, 0
    %v311 = vsel %vm183, %v304, 0
    %v313 = vsel %vm183, %v306, 0
    %v315 = vsel %vm183, %v308, 0
    %317 = vmatpush.xpose.msra.mxu0 0.0
    %318 = vmatpush.xpose.msra.mxu0 0.0
    %319 = vmatpush.xpose.msra.mxu0 0.0
    %320 = vmatpush.xpose.msra.mxu0 0.0
    %321 = vmatpush.xpose.msra.mxu0 0.0
    %322 = vmatpush.xpose.msra.mxu0 0.0
    %323 = vmatpush.xpose.msra.mxu0 0.0
    %324 = vmatpush.xpose.msra.mxu0 0.0
    %325 = vmatpush.xpose.msra.mxu0 0.0
    %326 = vmatpush.xpose.msra.mxu0 0.0
    %327 = vmatpush.xpose.msra.mxu0 0.0
    %328 = vmatpush.xpose.msra.mxu0 0.0
    %329 = vmatpush.xpose.msra.mxu0 0.0
    %330 = vmatpush.xpose.msra.mxu0 0.0
    %331 = vmatpush.xpose.msra.mxu0 %v315
    %332 = vmatpush.xpose.msra.mxu0 %v313
    %333 = vmatmul.f32.gmra.mxu0 %v309
    %v334 = vpop.f32.mrf.mxu0
    %v335 = vadd.f32 %v132, %v334
    %336 = vmatmul.f32.gmra.mxu0 %v311
    %v337 = vpop.f32.mrf.mxu0
    %v338 = vadd.f32 %v133, %v337
    %339 = vdwg.mxu0
    %v340 = vsel %vm217, %v335, -inf
    %341 = vmax.xlane.f32.xlu0 %v340
    %v342 = vpop.xlane.xlu0 %341
    %v343 = vsel %vm217, %v338, -inf
    %344 = vmax.xlane.f32.xlu0 %v343
    %v345 = vpop.xlane.xlu0 %344
    %v346 = vsub.f32 %v335, %v342
    %v347 = vsub.f32 %v338, %v345
    %v348 = vmul.f32 %v346, 1.442695
    %v349 = vpow.pop %v348
    %v350 = vmul.f32 %v347, 1.442695
    %v351 = vpow.pop %v350
    %v352 = vsel %vm217, %v349, 0.0
    %353 = vadd.xlane.f32.xlu0 %v352
    %v354 = vpop.xlane.xlu0 %353
    %v355 = vsel %vm217, %v351, 0.0
    %356 = vadd.xlane.f32.xlu0 %v355
    %v357 = vpop.xlane.xlu0 %356
    %v358 = vrcp.pop %v354
    %v359 = vmul.f32 %v354, %v358
    %v360 = vsub.f32 1.0, %v359
    %v361 = vmul.f32 %v358, %v360
    %v362 = vadd.f32 %v358, %v361
    %vm363 = vweird.f32 %v354
    %vm364 = vweird.f32 %v358
    %vm365 = vmor %vm363, %vm364
    %v366 = vsel %vm365, %v358, %v362
    %v367 = vand.u32 2147483647, %v354
    %vm368 = vcmp.eq.f32.partialorder %v367, 8.507059e+37
    %v369 = vand.u32 %v354, 2147483648
    %v370 = vor.u32 1.1754944e-38, %v369
    %v371 = vsel %vm368, %v370, %v366
    %v372 = vmul.f32 %v349, %v371
    %v373 = vrcp.pop %v357
    %v374 = vmul.f32 %v357, %v373
    %v375 = vsub.f32 1.0, %v374
    %v376 = vmul.f32 %v373, %v375
    %v377 = vadd.f32 %v373, %v376
    %vm378 = vweird.f32 %v357
    %vm379 = vweird.f32 %v373
    %vm380 = vmor %vm378, %vm379
    %v381 = vsel %vm380, %v373, %v377
    %v382 = vand.u32 2147483647, %v357
    %vm383 = vcmp.eq.f32.partialorder %v382, 8.507059e+37
    %v384 = vand.u32 %v357, 2147483648
    %v385 = vor.u32 1.1754944e-38, %v384
    %v386 = vsel %vm383, %v385, %v381
    %v387 = vmul.f32 %v351, %v386
    %388 = vrot.lane.b32.xlu0 %v166, 56
    %v389 = vpop.permute.xlu0 %388
    %390 = vrot.lane.b32.xlu0 %v169, 56
    %v391 = vpop.permute.xlu0 %390
    %v395 = vsel %vm217, %v372, 0
    %v398 = vsel %vm217, %v387, 0
    %400 = vmatpush.msra.mxu0 0.0
    %401 = vmatpush.msra.mxu0 0.0
    %402 = vmatpush.msra.mxu0 0.0
    %403 = vmatpush.msra.mxu0 0.0
    %404 = vmatpush.msra.mxu0 0.0
    %405 = vmatpush.msra.mxu0 0.0
    %406 = vmatpush.msra.mxu0 0.0
    %407 = vmatpush.msra.mxu0 0.0
    %408 = vmatpush.msra.mxu0 0.0
    %409 = vmatpush.msra.mxu0 0.0
    %410 = vmatpush.msra.mxu0 0.0
    %411 = vmatpush.msra.mxu0 0.0
    %412 = vmatpush.msra.mxu0 0.0
    %413 = vmatpush.msra.mxu0 0.0
    %414 = vmatpush.msra.mxu0 %v391
    %415 = vmatpush.msra.mxu0 %v389
    %416 = vmatmul.f32.gmra.mxu0 %v395
    %v417 = vpop.f32.mrf.mxu0
    %v418 = vadd.f32 0.0, %v417
    %419 = vmatmul.f32.gmra.mxu0 %v398
    %v420 = vpop.f32.mrf.mxu0
    %v421 = vadd.f32 0.0, %v420
    %422 = vdwg.mxu0
    %v424 = vsel %vm183, %v418, 0
    %v427 = vsel %vm183, %v421, 0
    %429 = vmatpush.msra.mxu0 0.0
    %430 = vmatpush.msra.mxu0 0.0
    %431 = vmatpush.msra.mxu0 0.0
    %432 = vmatpush.msra.mxu0 0.0
    %433 = vmatpush.msra.mxu0 0.0
    %434 = vmatpush.msra.mxu0 0.0
    %435 = vmatpush.msra.mxu0 0.0
    %436 = vmatpush.msra.mxu0 0.0
    %437 = vmatpush.msra.mxu0 0.0
    %438 = vmatpush.msra.mxu0 0.0
    %439 = vmatpush.msra.mxu0 0.0
    %440 = vmatpush.msra.mxu0 0.0
    %441 = vmatpush.msra.mxu0 0.0
    %442 = vmatpush.msra.mxu0 0.0
    %443 = vmatpush.msra.mxu0 0.0
    %444 = vmatpush.msra.mxu0 %v174
    %445 = vmatmul.f32.gmra.mxu0 %v424
    %v446 = vpop.f32.mrf.mxu0
    %v447 = vadd.f32 0.0, %v446
    %448 = vmatmul.f32.gmra.mxu0 %v427
    %v449 = vpop.f32.mrf.mxu0
    %v450 = vadd.f32 0.0, %v449
    %451 = vdwg.mxu0
    %v453 = vsel %vm183, %v296, 0
    %v456 = vsel %vm183, %v299, 0
    %458 = vmatpush.msra.mxu0 0.0
    %459 = vmatpush.msra.mxu0 0.0
    %460 = vmatpush.msra.mxu0 0.0
    %461 = vmatpush.msra.mxu0 0.0
    %462 = vmatpush.msra.mxu0 0.0
    %463 = vmatpush.msra.mxu0 0.0
    %464 = vmatpush.msra.mxu0 0.0
    %465 = vmatpush.msra.mxu0 0.0
    %466 = vmatpush.msra.mxu0 0.0
    %467 = vmatpush.msra.mxu0 0.0
    %468 = vmatpush.msra.mxu0 0.0
    %469 = vmatpush.msra.mxu0 0.0
    %470 = vmatpush.msra.mxu0 0.0
    %471 = vmatpush.msra.mxu0 0.0
    %472 = vmatpush.msra.mxu0 0.0
    %473 = vmatpush.msra.mxu0 %v173
    %474 = vmatmul.f32.gmra.mxu0 %v453
    %v475 = vpop.f32.mrf.mxu0
    %v476 = vadd.f32 %v447, %v475
    %477 = vmatmul.f32.gmra.mxu0 %v456
    %v478 = vpop.f32.mrf.mxu0
    %v479 = vadd.f32 %v450, %v478
    %480 = vdwg.mxu0
    %481 = vrot.lane.b32.xlu0 %v171, 112
    %v482 = vpop.permute.xlu0 %481
    %483 = vrot.lane.b32.xlu0 %v172, 112
    %v484 = vpop.permute.xlu0 %483
    %485 = vrot.lane.b32.xlu0 %v166, 80
    %v486 = vpop.permute.xlu0 %485
    %487 = vrot.lane.b32.xlu0 %v169, 80
    %v488 = vpop.permute.xlu0 %487
    %v489 = vsel %vm183, %v482, 0
    %v491 = vsel %vm183, %v484, 0
    %v493 = vsel %vm183, %v486, 0
    %v495 = vsel %vm183, %v488, 0
    %497 = vmatpush.xpose.msra.mxu0 0.0
    %498 = vmatpush.xpose.msra.mxu0 0.0
    %499 = vmatpush.xpose.msra.mxu0 0.0
    %500 = vmatpush.xpose.msra.mxu0 0.0
    %501 = vmatpush.xpose.msra.mxu0 0.0
    %502 = vmatpush.xpose.msra.mxu0 0.0
    %503 = vmatpush.xpose.msra.mxu0 0.0
    %504 = vmatpush.xpose.msra.mxu0 0.0
    %505 = vmatpush.xpose.msra.mxu0 0.0
    %506 = vmatpush.xpose.msra.mxu0 0.0
    %507 = vmatpush.xpose.msra.mxu0 0.0
    %508 = vmatpush.xpose.msra.mxu0 0.0
    %509 = vmatpush.xpose.msra.mxu0 0.0
    %510 = vmatpush.xpose.msra.mxu0 0.0
    %511 = vmatpush.xpose.msra.mxu0 %v495
    %512 = vmatpush.xpose.msra.mxu0 %v493
    %513 = vmatmul.f32.gmra.mxu0 %v489
    %v514 = vpop.f32.mrf.mxu0
    %v515 = vadd.f32 %v132, %v514
    %516 = vmatmul.f32.gmra.mxu0 %v491
    %v517 = vpop.f32.mrf.mxu0
    %v518 = vadd.f32 %v133, %v517
    %519 = vdwg.mxu0
    %v520 = vsel %vm217, %v515, -inf
    %521 = vmax.xlane.f32.xlu0 %v520
    %v522 = vpop.xlane.xlu0 %521
    %v523 = vsel %vm217, %v518, -inf
    %524 = vmax.xlane.f32.xlu0 %v523
    %v525 = vpop.xlane.xlu0 %524
    %v526 = vsub.f32 %v515, %v522
    %v527 = vsub.f32 %v518, %v525
    %v528 = vmul.f32 %v526, 1.442695
    %v529 = vpow.pop %v528
    %v530 = vmul.f32 %v527, 1.442695
    %v531 = vpow.pop %v530
    %v532 = vsel %vm217, %v529, 0.0
    %533 = vadd.xlane.f32.xlu0 %v532
    %v534 = vpop.xlane.xlu0 %533
    %v535 = vsel %vm217, %v531, 0.0
    %536 = vadd.xlane.f32.xlu0 %v535
    %v537 = vpop.xlane.xlu0 %536
    %v538 = vrcp.pop %v534
    %v539 = vmul.f32 %v534, %v538
    %v540 = vsub.f32 1.0, %v539
    %v541 = vmul.f32 %v538, %v540
    %v542 = vadd.f32 %v538, %v541
    %vm543 = vweird.f32 %v534
    %vm544 = vweird.f32 %v538
    %vm545 = vmor %vm543, %vm544
    %v546 = vsel %vm545, %v538, %v542
    %v547 = vand.u32 2147483647, %v534
    %vm548 = vcmp.eq.f32.partialorder %v547, 8.507059e+37
    %v549 = vand.u32 %v534, 2147483648
    %v550 = vor.u32 1.1754944e-38, %v549
    %v551 = vsel %vm548, %v550, %v546
    %v552 = vmul.f32 %v529, %v551
    %v553 = vrcp.pop %v537
    %v554 = vmul.f32 %v537, %v553
    %v555 = vsub.f32 1.0, %v554
    %v556 = vmul.f32 %v553, %v555
    %v557 = vadd.f32 %v553, %v556
    %vm558 = vweird.f32 %v537
    %vm559 = vweird.f32 %v553
    %vm560 = vmor %vm558, %vm559
    %v561 = vsel %vm560, %v553, %v557
    %v562 = vand.u32 2147483647, %v537
    %vm563 = vcmp.eq.f32.partialorder %v562, 8.507059e+37
    %v564 = vand.u32 %v537, 2147483648
    %v565 = vor.u32 1.1754944e-38, %v564
    %v566 = vsel %vm563, %v565, %v561
    %v567 = vmul.f32 %v531, %v566
    %568 = vrot.lane.b32.xlu0 %v166, 48
    %v569 = vpop.permute.xlu0 %568
    %570 = vrot.lane.b32.xlu0 %v169, 48
    %v571 = vpop.permute.xlu0 %570
    %v575 = vsel %vm217, %v552, 0
    %v578 = vsel %vm217, %v567, 0
    %580 = vmatpush.msra.mxu0 0.0
    %581 = vmatpush.msra.mxu0 0.0
    %582 = vmatpush.msra.mxu0 0.0
    %583 = vmatpush.msra.mxu0 0.0
    %584 = vmatpush.msra.mxu0 0.0
    %585 = vmatpush.msra.mxu0 0.0
    %586 = vmatpush.msra.mxu0 0.0
    %587 = vmatpush.msra.mxu0 0.0
    %588 = vmatpush.msra.mxu0 0.0
    %589 = vmatpush.msra.mxu0 0.0
    %590 = vmatpush.msra.mxu0 0.0
    %591 = vmatpush.msra.mxu0 0.0
    %592 = vmatpush.msra.mxu0 0.0
    %593 = vmatpush.msra.mxu0 0.0
    %594 = vmatpush.msra.mxu0 %v571
    %595 = vmatpush.msra.mxu0 %v569
    %596 = vmatmul.f32.gmra.mxu0 %v575
    %v597 = vpop.f32.mrf.mxu0
    %v598 = vadd.f32 0.0, %v597
    %599 = vmatmul.f32.gmra.mxu0 %v578
    %v600 = vpop.f32.mrf.mxu0
    %v601 = vadd.f32 0.0, %v600
    %602 = vdwg.mxu0
    %v604 = vsel %vm183, %v598, 0
    %v607 = vsel %vm183, %v601, 0
    %609 = vmatpush.msra.mxu0 0.0
    %610 = vmatpush.msra.mxu0 0.0
    %611 = vmatpush.msra.mxu0 0.0
    %612 = vmatpush.msra.mxu0 0.0
    %613 = vmatpush.msra.mxu0 0.0
    %614 = vmatpush.msra.mxu0 0.0
    %615 = vmatpush.msra.mxu0 0.0
    %616 = vmatpush.msra.mxu0 0.0
    %617 = vmatpush.msra.mxu0 0.0
    %618 = vmatpush.msra.mxu0 0.0
    %619 = vmatpush.msra.mxu0 0.0
    %620 = vmatpush.msra.mxu0 0.0
    %621 = vmatpush.msra.mxu0 0.0
    %622 = vmatpush.msra.mxu0 0.0
    %623 = vmatpush.msra.mxu0 0.0
    %624 = vmatpush.msra.mxu0 %v175
    %625 = vmatmul.f32.gmra.mxu0 %v604
    %v626 = vpop.f32.mrf.mxu0
    %v627 = vadd.f32 0.0, %v626
    %628 = vmatmul.f32.gmra.mxu0 %v607
    %v629 = vpop.f32.mrf.mxu0
    %v630 = vadd.f32 0.0, %v629
    %631 = vdwg.mxu0
    %v632 = vadd.f32 %v476, %v627
    %v633 = vadd.f32 %v479, %v630
    %634 = vrot.lane.b32.xlu0 %v171, 104
    %v635 = vpop.permute.xlu0 %634
    %636 = vrot.lane.b32.xlu0 %v172, 104
    %v637 = vpop.permute.xlu0 %636
    %638 = vrot.lane.b32.xlu0 %v166, 72
    %v639 = vpop.permute.xlu0 %638
    %640 = vrot.lane.b32.xlu0 %v169, 72
    %v641 = vpop.permute.xlu0 %640
    %v642 = vsel %vm183, %v635, 0
    %v644 = vsel %vm183, %v637, 0
    %v646 = vsel %vm183, %v639, 0
    %v648 = vsel %vm183, %v641, 0
    %650 = vmatpush.xpose.msra.mxu0 0.0
    %651 = vmatpush.xpose.msra.mxu0 0.0
    %652 = vmatpush.xpose.msra.mxu0 0.0
    %653 = vmatpush.xpose.msra.mxu0 0.0
    %654 = vmatpush.xpose.msra.mxu0 0.0
    %655 = vmatpush.xpose.msra.mxu0 0.0
    %656 = vmatpush.xpose.msra.mxu0 0.0
    %657 = vmatpush.xpose.msra.mxu0 0.0
    %658 = vmatpush.xpose.msra.mxu0 0.0
    %659 = vmatpush.xpose.msra.mxu0 0.0
    %660 = vmatpush.xpose.msra.mxu0 0.0
    %661 = vmatpush.xpose.msra.mxu0 0.0
    %662 = vmatpush.xpose.msra.mxu0 0.0
    %663 = vmatpush.xpose.msra.mxu0 0.0
    %664 = vmatpush.xpose.msra.mxu0 %v648
    %665 = vmatpush.xpose.msra.mxu0 %v646
    %666 = vmatmul.f32.gmra.mxu0 %v642
    %v667 = vpop.f32.mrf.mxu0
    %v668 = vadd.f32 %v132, %v667
    %669 = vmatmul.f32.gmra.mxu0 %v644
    %v670 = vpop.f32.mrf.mxu0
    %v671 = vadd.f32 %v133, %v670
    %672 = vdwg.mxu0
    %v673 = vsel %vm217, %v668, -inf
    %674 = vmax.xlane.f32.xlu0 %v673
    %v675 = vpop.xlane.xlu0 %674
    %v676 = vsel %vm217, %v671, -inf
    %677 = vmax.xlane.f32.xlu0 %v676
    %v678 = vpop.xlane.xlu0 %677
    %v679 = vsub.f32 %v668, %v675
    %v680 = vsub.f32 %v671, %v678
    %v681 = vmul.f32 %v679, 1.442695
    %v682 = vpow.pop %v681
    %v683 = vmul.f32 %v680, 1.442695
    %v684 = vpow.pop %v683
    %v685 = vsel %vm217, %v682, 0.0
    %686 = vadd.xlane.f32.xlu0 %v685
    %v687 = vpop.xlane.xlu0 %686
    %v688 = vsel %vm217, %v684, 0.0
    %689 = vadd.xlane.f32.xlu0 %v688
    %v690 = vpop.xlane.xlu0 %689
    %v691 = vrcp.pop %v687
    %v692 = vmul.f32 %v687, %v691
    %v693 = vsub.f32 1.0, %v692
    %v694 = vmul.f32 %v691, %v693
    %v695 = vadd.f32 %v691, %v694
    %vm696 = vweird.f32 %v687
    %vm697 = vweird.f32 %v691
    %vm698 = vmor %vm696, %vm697
    %v699 = vsel %vm698, %v691, %v695
    %v700 = vand.u32 2147483647, %v687
    %vm701 = vcmp.eq.f32.partialorder %v700, 8.507059e+37
    %v702 = vand.u32 %v687, 2147483648
    %v703 = vor.u32 1.1754944e-38, %v702
    %v704 = vsel %vm701, %v703, %v699
    %v705 = vmul.f32 %v682, %v704
    %v706 = vrcp.pop %v690
    %v707 = vmul.f32 %v690, %v706
    %v708 = vsub.f32 1.0, %v707
    %v709 = vmul.f32 %v706, %v708
    %v710 = vadd.f32 %v706, %v709
    %vm711 = vweird.f32 %v690
    %vm712 = vweird.f32 %v706
    %vm713 = vmor %vm711, %vm712
    %v714 = vsel %vm713, %v706, %v710
    %v715 = vand.u32 2147483647, %v690
    %vm716 = vcmp.eq.f32.partialorder %v715, 8.507059e+37
    %v717 = vand.u32 %v690, 2147483648
    %v718 = vor.u32 1.1754944e-38, %v717
    %v719 = vsel %vm716, %v718, %v714
    %v720 = vmul.f32 %v684, %v719
    %721 = vrot.lane.b32.xlu0 %v166, 40
    %v722 = vpop.permute.xlu0 %721
    %723 = vrot.lane.b32.xlu0 %v169, 40
    %v724 = vpop.permute.xlu0 %723
    %v728 = vsel %vm217, %v705, 0
    %v731 = vsel %vm217, %v720, 0
    %733 = vmatpush.msra.mxu0 0.0
    %734 = vmatpush.msra.mxu0 0.0
    %735 = vmatpush.msra.mxu0 0.0
    %736 = vmatpush.msra.mxu0 0.0
    %737 = vmatpush.msra.mxu0 0.0
    %738 = vmatpush.msra.mxu0 0.0
    %739 = vmatpush.msra.mxu0 0.0
    %740 = vmatpush.msra.mxu0 0.0
    %741 = vmatpush.msra.mxu0 0.0
    %742 = vmatpush.msra.mxu0 0.0
    %743 = vmatpush.msra.mxu0 0.0
    %744 = vmatpush.msra.mxu0 0.0
    %745 = vmatpush.msra.mxu0 0.0
    %746 = vmatpush.msra.mxu0 0.0
    %747 = vmatpush.msra.mxu0 %v724
    %748 = vmatpush.msra.mxu0 %v722
    %749 = vmatmul.f32.gmra.mxu0 %v728
    %v750 = vpop.f32.mrf.mxu0
    %v751 = vadd.f32 0.0, %v750
    %752 = vmatmul.f32.gmra.mxu0 %v731
    %v753 = vpop.f32.mrf.mxu0
    %v754 = vadd.f32 0.0, %v753
    %755 = vdwg.mxu0
    %v757 = vsel %vm183, %v751, 0
    %v760 = vsel %vm183, %v754, 0
    %762 = vmatpush.msra.mxu0 0.0
    %763 = vmatpush.msra.mxu0 0.0
    %764 = vmatpush.msra.mxu0 0.0
    %765 = vmatpush.msra.mxu0 0.0
    %766 = vmatpush.msra.mxu0 0.0
    %767 = vmatpush.msra.mxu0 0.0
    %768 = vmatpush.msra.mxu0 0.0
    %769 = vmatpush.msra.mxu0 0.0
    %770 = vmatpush.msra.mxu0 0.0
    %771 = vmatpush.msra.mxu0 0.0
    %772 = vmatpush.msra.mxu0 0.0
    %773 = vmatpush.msra.mxu0 0.0
    %774 = vmatpush.msra.mxu0 0.0
    %775 = vmatpush.msra.mxu0 0.0
    %776 = vmatpush.msra.mxu0 0.0
    %777 = vmatpush.msra.mxu0 %v176
    %778 = vmatmul.f32.gmra.mxu0 %v757
    %v779 = vpop.f32.mrf.mxu0
    %v780 = vadd.f32 0.0, %v779
    %781 = vmatmul.f32.gmra.mxu0 %v760
    %v782 = vpop.f32.mrf.mxu0
    %v783 = vadd.f32 0.0, %v782
    %784 = vdwg.mxu0
    %v785 = vadd.f32 %v632, %v780
    %v786 = vadd.f32 %v633, %v783
    %v787 = vld [vmem:[%s7] sm:$0x1]
    %v789 = vperm.slane %v787, 0
    %v791 = vadd.f32 %v785, %v789
    %v792 = vadd.f32 %v786, %v789
    %v793 = vadd.f32 %v791, %v130
    %v794 = vadd.f32 %v792, %v131
    %v795 = vld [vmem:[%s8] sm:$0x1]
    %v796 = vld [vmem:[%s9] sm:$0x1]
    %v797 = vsel %vm70, %v793, 0.0
    %798 = vadd.xlane.f32.xlu0 %v797
    %v799 = vpop.xlane.xlu0 %798
    %v800 = vsel %vm70, %v794, 0.0
    %801 = vadd.xlane.f32.xlu0 %v800
    %v802 = vpop.xlane.xlu0 %801
    %v803 = vmul.f32 %v799, %v83
    %v804 = vmul.f32 %v802, %v83
    %v805 = vsub.f32 %v793, %v803
    %v806 = vsub.f32 %v794, %v804
    %v807 = vmul.f32 %v805, %v805
    %v808 = vmul.f32 %v806, %v806
    %v809 = vsel %vm70, %v807, 0.0
    %810 = vadd.xlane.f32.xlu0 %v809
    %v811 = vpop.xlane.xlu0 %810
    %v812 = vsel %vm70, %v808, 0.0
    %813 = vadd.xlane.f32.xlu0 %v812
    %v814 = vpop.xlane.xlu0 %813
    %v815 = vmul.f32 %v811, %v83
    %v816 = vmul.f32 %v814, %v83
    %v817 = vadd.f32 %v815, 1e-12
    %v818 = vadd.f32 %v816, 1e-12
    %v819 = vrsqrt.pop %v817
    %v820 = vmul.f32 %v819, %v817
    %v821 = vmul.f32 %v820, %v819
    %v822 = vmul.f32 0.5, %v821
    %v823 = vsub.f32 1.5, %v822
    %v824 = vmul.f32 %v819, %v823
    %vm825 = vweird.f32 %v817
    %vm826 = vweird.f32 %v819
    %vm827 = vmor %vm825, %vm826
    %v828 = vsel %vm827, %v819, %v824
    %v829 = vrsqrt.pop %v818
    %v830 = vmul.f32 %v829, %v818
    %v831 = vmul.f32 %v830, %v829
    %v832 = vmul.f32 0.5, %v831
    %v833 = vsub.f32 1.5, %v832
    %v834 = vmul.f32 %v829, %v833
    %vm835 = vweird.f32 %v818
    %vm836 = vweird.f32 %v829
    %vm837 = vmor %vm835, %vm836
    %v838 = vsel %vm837, %v829, %v834
    %v839 = vmul.f32 %v805, %v828
    %v840 = vmul.f32 %v806, %v838
    %v842 = vperm.slane %v795, 0
    %v844 = vmul.f32 %v839, %v842
    %v845 = vmul.f32 %v840, %v842
    %v847 = vperm.slane %v796, 0
    %v849 = vadd.f32 %v844, %v847
    %v850 = vadd.f32 %v845, %v847
    %v851 = vld [vmem:[%s10] sm:$0xff]
    %v852 = vld [vmem:[%s10 + $0x8] sm:$0xff]
    %v853 = vld [vmem:[%s10 + $0x10] sm:$0xff]
    %v854 = vld [vmem:[%s10 + $0x18] sm:$0xff]
    %v855 = vld [vmem:[%s11] sm:$0x1]
    %v857 = vperm.slane %v855, 0
    %v860 = vsel %vm70, %v849, 0
    %v863 = vsel %vm70, %v850, 0
    %865 = vmatpush.msra.mxu0 0.0
    %866 = vmatpush.msra.mxu0 0.0
    %867 = vmatpush.msra.mxu0 0.0
    %868 = vmatpush.msra.mxu0 0.0
    %869 = vmatpush.msra.mxu0 0.0
    %870 = vmatpush.msra.mxu0 0.0
    %871 = vmatpush.msra.mxu0 0.0
    %872 = vmatpush.msra.mxu0 0.0
    %873 = vmatpush.msra.mxu0 0.0
    %874 = vmatpush.msra.mxu0 0.0
    %875 = vmatpush.msra.mxu0 0.0
    %876 = vmatpush.msra.mxu0 0.0
    %877 = vmatpush.msra.mxu0 %v854
    %878 = vmatpush.msra.mxu0 %v853
    %879 = vmatpush.msra.mxu0 %v852
    %880 = vmatpush.msra.mxu0 %v851
    %881 = vmatmul.f32.gmra.mxu0 %v860
    %v882 = vpop.f32.mrf.mxu0
    %v883 = vadd.f32 %v857, %v882
    %884 = vmatmul.f32.gmra.mxu0 %v863
    %v885 = vpop.f32.mrf.mxu0
    %v886 = vadd.f32 %v857, %v885
    %887 = vdwg.mxu0
    %v888 = vmul.f32 %v883, 0.5
    %v889 = vmul.f32 %v886, 0.5
    %v890 = vmul.f32 %v883, 0.044715
    %v891 = vmul.f32 %v886, 0.044715
    %v892 = vmul.f32 %v890, %v883
    %v893 = vmul.f32 %v891, %v886
    %v894 = vmul.f32 %v892, %v883
    %v895 = vmul.f32 %v893, %v886
    %v896 = vadd.f32 %v883, %v894
    %v897 = vadd.f32 %v886, %v895
    %v898 = vmul.f32 %v896, 0.7978846
    %v899 = vmul.f32 %v897, 0.7978846
    %v900 = vtanh.pop %v898
    %v901 = vtanh.pop %v899
    %v902 = vadd.f32 %v900, 1.0
    %v903 = vadd.f32 %v901, 1.0
    %v904 = vmul.f32 %v888, %v902
    %v905 = vmul.f32 %v889, %v903
    %v906 = vld [vmem:[%s12] sm:$0xff]
    %v907 = vld [vmem:[%s12 + $0x8] sm:$0xff]
    %v908 = vld [vmem:[%s12 + $0x10] sm:$0xff]
    %v909 = vld [vmem:[%s12 + $0x18] sm:$0xff]
    %v910 = vld [vmem:[%s12 + $0x20] sm:$0xff]
    %v911 = vld [vmem:[%s12 + $0x28] sm:$0xff]
    %v912 = vld [vmem:[%s12 + $0x30] sm:$0xff]
    %v913 = vld [vmem:[%s12 + $0x38] sm:$0xff]
    %v914 = vld [vmem:[%s13] sm:$0x1]
    %v916 = vperm.slane %v914, 0
    %vm918 = vcmask 523264
    %v920 = vsel %vm918, %v904, 0
    %v923 = vsel %vm918, %v905, 0
    %925 = vmatpush.msra.mxu0 0.0
    %926 = vmatpush.msra.mxu0 0.0
    %927 = vmatpush.msra.mxu0 0.0
    %928 = vmatpush.msra.mxu0 0.0
    %929 = vmatpush.msra.mxu0 0.0
    %930 = vmatpush.msra.mxu0 0.0
    %931 = vmatpush.msra.mxu0 0.0
    %932 = vmatpush.msra.mxu0 0.0
    %933 = vmatpush.msra.mxu0 %v913
    %934 = vmatpush.msra.mxu0 %v912
    %935 = vmatpush.msra.mxu0 %v911
    %936 = vmatpush.msra.mxu0 %v910
    %937 = vmatpush.msra.mxu0 %v909
    %938 = vmatpush.msra.mxu0 %v908
    %939 = vmatpush.msra.mxu0 %v907
    %940 = vmatpush.msra.mxu0 %v906
    %941 = vmatmul.f32.gmra.mxu0 %v920
    %v942 = vpop.f32.mrf.mxu0
    %v943 = vadd.f32 %v916, %v942
    %944 = vmatmul.f32.gmra.mxu0 %v923
    %v945 = vpop.f32.mrf.mxu0
    %v946 = vadd.f32 %v916, %v945
    %947 = vdwg.mxu0
    %v948 = vadd.f32 %v943, %v849
    %v949 = vadd.f32 %v946, %v850
    %v950 = vld [vmem:[%s14] sm:$0x1]
    %v951 = vld [vmem:[%s15] sm:$0x1]
    %v952 = vsel %vm70, %v948, 0.0
    %953 = vadd.xlane.f32.xlu0 %v952
    %v954 = vpop.xlane.xlu0 %953
    %v955 = vsel %vm70, %v949, 0.0
    %956 = vadd.xlane.f32.xlu0 %v955
    %v957 = vpop.xlane.xlu0 %956
    %v958 = vmul.f32 %v954, %v83
    %v959 = vmul.f32 %v957, %v83
    %v960 = vsub.f32 %v948, %v958
    %v961 = vsub.f32 %v949, %v959
    %v962 = vmul.f32 %v960, %v960
    %v963 = vmul.f32 %v961, %v961
    %v964 = vsel %vm70, %v962, 0.0
    %965 = vadd.xlane.f32.xlu0 %v964
    %v966 = vpop.xlane.xlu0 %965
    %v967 = vsel %vm70, %v963, 0.0
    %968 = vadd.xlane.f32.xlu0 %v967
    %v969 = vpop.xlane.xlu0 %968
    %v970 = vmul.f32 %v966, %v83
    %v971 = vmul.f32 %v969, %v83
    %v972 = vadd.f32 %v970, 1e-12
    %v973 = vadd.f32 %v971, 1e-12
    %v974 = vrsqrt.pop %v972
    %v975 = vmul.f32 %v974, %v972
    %v976 = vmul.f32 %v975, %v974
    %v977 = vmul.f32 0.5, %v976
    %v978 = vsub.f32 1.5, %v977
    %v979 = vmul.f32 %v974, %v978
    %vm980 = vweird.f32 %v972
    %vm981 = vweird.f32 %v974
    %vm982 = vmor %vm980, %vm981
    %v983 = vsel %vm982, %v974, %v979
    %v984 = vrsqrt.pop %v973
    %v985 = vmul.f32 %v984, %v973
    %v986 = vmul.f32 %v985, %v984
    %v987 = vmul.f32 0.5, %v986
    %v988 = vsub.f32 1.5, %v987
    %v989 = vmul.f32 %v984, %v988
    %vm990 = vweird.f32 %v973
    %vm991 = vweird.f32 %v984
    %vm992 = vmor %vm990, %vm991
    %v993 = vsel %vm992, %v984, %v989
    %v994 = vmul.f32 %v960, %v983
    %v995 = vmul.f32 %v961, %v993
    %v997 = vperm.slane %v950, 0
    %v999 = vmul.f32 %v994, %v997
    %v1000 = vmul.f32 %v995, %v997
    %v1002 = vperm.slane %v951, 0
    %v1004 = vadd.f32 %v999, %v1002
    %v1005 = vadd.f32 %v1000, %v1002
    %s1006 = scalar_lea.vmem %s4, 32
    %v1007 = vld [vmem:[%s1006] sm:$0xff]
    %v1008 = vld [vmem:[%s1006 + $0x8] sm:$0xff]
    %v1009 = vld [vmem:[%s1006 + $0x10] sm:$0xff]
    %v1010 = vld [vmem:[%s1006 + $0x18] sm:$0xff]
    %s1011 = scalar_lea.vmem %s5, 1
    %v1012 = vld [vmem:[%s1011] sm:$0x1]
    %v1014 = vperm.slane %v1012, 0
    %v1017 = vsel %vm70, %v1004, 0
    %v1020 = vsel %vm70, %v1005, 0
    %1022 = vmatpush.msra.mxu0 0.0
    %1023 = vmatpush.msra.mxu0 0.0
    %1024 = vmatpush.msra.mxu0 0.0
    %1025 = vmatpush.msra.mxu0 0.0
    %1026 = vmatpush.msra.mxu0 0.0
    %1027 = vmatpush.msra.mxu0 0.0
    %1028 = vmatpush.msra.mxu0 0.0
    %1029 = vmatpush.msra.mxu0 0.0
    %1030 = vmatpush.msra.mxu0 0.0
    %1031 = vmatpush.msra.mxu0 0.0
    %1032 = vmatpush.msra.mxu0 0.0
    %1033 = vmatpush.msra.mxu0 0.0
    %1034 = vmatpush.msra.mxu0 %v1010
    %1035 = vmatpush.msra.mxu0 %v1009
    %1036 = vmatpush.msra.mxu0 %v1008
    %1037 = vmatpush.msra.mxu0 %v1007
    %1038 = vmatmul.f32.gmra.mxu0 %v1017
    %v1039 = vpop.f32.mrf.mxu0
    %v1040 = vadd.f32 %v1014, %v1039
    %1041 = vmatmul.f32.gmra.mxu0 %v1020
    %v1042 = vpop.f32.mrf.mxu0
    %v1043 = vadd.f32 %v1014, %v1042
    %1044 = vdwg.mxu0
    %v1045 = vmul.f32 %v1040, 0.35355338
    %v1046 = vmul.f32 %v1043, 0.35355338
    %s1047 = scalar_lea.vmem %s6, 32
    %v1048 = vld [vmem:[%s1047] sm:$0xff]
    %v1049 = vld [vmem:[%s1047 + $0x8] sm:$0xff]
    %v1050 = vld [vmem:[%s1047 + $0x10] sm:$0xff]
    %v1051 = vld [vmem:[%s1047 + $0x18] sm:$0xff]
    %1054 = vrot.lane.b32.xlu0 %v1040, 96
    %v1055 = vpop.permute.xlu0 %1054
    %1056 = vrot.lane.b32.xlu0 %v1043, 96
    %v1057 = vpop.permute.xlu0 %1056
    %v1059 = vsel %vm183, %v1045, 0
    %v1062 = vsel %vm183, %v1046, 0
    %v1064 = vsel %vm183, %v1055, 0
    %v1066 = vsel %vm183, %v1057, 0
    %1068 = vmatpush.xpose.msra.mxu0 0.0
    %1069 = vmatpush.xpose.msra.mxu0 0.0
    %1070 = vmatpush.xpose.msra.mxu0 0.0
    %1071 = vmatpush.xpose.msra.mxu0 0.0
    %1072 = vmatpush.xpose.msra.mxu0 0.0
    %1073 = vmatpush.xpose.msra.mxu0 0.0
    %1074 = vmatpush.xpose.msra.mxu0 0.0
    %1075 = vmatpush.xpose.msra.mxu0 0.0
    %1076 = vmatpush.xpose.msra.mxu0 0.0
    %1077 = vmatpush.xpose.msra.mxu0 0.0
    %1078 = vmatpush.xpose.msra.mxu0 0.0
    %1079 = vmatpush.xpose.msra.mxu0 0.0
    %1080 = vmatpush.xpose.msra.mxu0 0.0
    %1081 = vmatpush.xpose.msra.mxu0 0.0
    %1082 = vmatpush.xpose.msra.mxu0 %v1066
    %1083 = vmatpush.xpose.msra.mxu0 %v1064
    %1084 = vmatmul.f32.gmra.mxu0 %v1059
    %v1085 = vpop.f32.mrf.mxu0
    %v1086 = vadd.f32 %v132, %v1085
    %1087 = vmatmul.f32.gmra.mxu0 %v1062
    %v1088 = vpop.f32.mrf.mxu0
    %v1089 = vadd.f32 %v133, %v1088
    %1090 = vdwg.mxu0
    %v1091 = vsel %vm217, %v1086, -inf
    %1092 = vmax.xlane.f32.xlu0 %v1091
    %v1093 = vpop.xlane.xlu0 %1092
    %v1094 = vsel %vm217, %v1089, -inf
    %1095 = vmax.xlane.f32.xlu0 %v1094
    %v1096 = vpop.xlane.xlu0 %1095
    %v1097 = vsub.f32 %v1086, %v1093
    %v1098 = vsub.f32 %v1089, %v1096
    %v1099 = vmul.f32 %v1097, 1.442695
    %v1100 = vpow.pop %v1099
    %v1101 = vmul.f32 %v1098, 1.442695
    %v1102 = vpow.pop %v1101
    %v1103 = vsel %vm217, %v1100, 0.0
    %1104 = vadd.xlane.f32.xlu0 %v1103
    %v1105 = vpop.xlane.xlu0 %1104
    %v1106 = vsel %vm217, %v1102, 0.0
    %1107 = vadd.xlane.f32.xlu0 %v1106
    %v1108 = vpop.xlane.xlu0 %1107
    %v1109 = vrcp.pop %v1105
    %v1110 = vmul.f32 %v1105, %v1109
    %v1111 = vsub.f32 1.0, %v1110
    %v1112 = vmul.f32 %v1109, %v1111
    %v1113 = vadd.f32 %v1109, %v1112
    %vm1114 = vweird.f32 %v1105
    %vm1115 = vweird.f32 %v1109
    %vm1116 = vmor %vm1114, %vm1115
    %v1117 = vsel %vm1116, %v1109, %v1113
    %v1118 = vand.u32 2147483647, %v1105
    %vm1119 = vcmp.eq.f32.partialorder %v1118, 8.507059e+37
    %v1120 = vand.u32 %v1105, 2147483648
    %v1121 = vor.u32 1.1754944e-38, %v1120
    %v1122 = vsel %vm1119, %v1121, %v1117
    %v1123 = vmul.f32 %v1100, %v1122
    %v1124 = vrcp.pop %v1108
    %v1125 = vmul.f32 %v1108, %v1124
    %v1126 = vsub.f32 1.0, %v1125
    %v1127 = vmul.f32 %v1124, %v1126
    %v1128 = vadd.f32 %v1124, %v1127
    %vm1129 = vweird.f32 %v1108
    %vm1130 = vweird.f32 %v1124
    %vm1131 = vmor %vm1129, %vm1130
    %v1132 = vsel %vm1131, %v1124, %v1128
    %v1133 = vand.u32 2147483647, %v1108
    %vm1134 = vcmp.eq.f32.partialorder %v1133, 8.507059e+37
    %v1135 = vand.u32 %v1108, 2147483648
    %v1136 = vor.u32 1.1754944e-38, %v1135
    %v1137 = vsel %vm1134, %v1136, %v1132
    %v1138 = vmul.f32 %v1102, %v1137
    %1139 = vrot.lane.b32.xlu0 %v1040, 64
    %v1140 = vpop.permute.xlu0 %1139
    %1141 = vrot.lane.b32.xlu0 %v1043, 64
    %v1142 = vpop.permute.xlu0 %1141
    %v1146 = vsel %vm217, %v1123, 0
    %v1149 = vsel %vm217, %v1138, 0
    %1151 = vmatpush.msra.mxu0 0.0
    %1152 = vmatpush.msra.mxu0 0.0
    %1153 = vmatpush.msra.mxu0 0.0
    %1154 = vmatpush.msra.mxu0 0.0
    %1155 = vmatpush.msra.mxu0 0.0
    %1156 = vmatpush.msra.mxu0 0.0
    %1157 = vmatpush.msra.mxu0 0.0
    %1158 = vmatpush.msra.mxu0 0.0
    %1159 = vmatpush.msra.mxu0 0.0
    %1160 = vmatpush.msra.mxu0 0.0
    %1161 = vmatpush.msra.mxu0 0.0
    %1162 = vmatpush.msra.mxu0 0.0
    %1163 = vmatpush.msra.mxu0 0.0
    %1164 = vmatpush.msra.mxu0 0.0
    %1165 = vmatpush.msra.mxu0 %v1142
    %1166 = vmatpush.msra.mxu0 %v1140
    %1167 = vmatmul.f32.gmra.mxu0 %v1146
    %v1168 = vpop.f32.mrf.mxu0
    %v1169 = vadd.f32 0.0, %v1168
    %1170 = vmatmul.f32.gmra.mxu0 %v1149
    %v1171 = vpop.f32.mrf.mxu0
    %v1172 = vadd.f32 0.0, %v1171
    %1173 = vdwg.mxu0
    %1174 = vrot.lane.b32.xlu0 %v1045, 120
    %v1175 = vpop.permute.xlu0 %1174
    %1176 = vrot.lane.b32.xlu0 %v1046, 120
    %v1177 = vpop.permute.xlu0 %1176
    %1178 = vrot.lane.b32.xlu0 %v1040, 88
    %v1179 = vpop.permute.xlu0 %1178
    %1180 = vrot.lane.b32.xlu0 %v1043, 88
    %v1181 = vpop.permute.xlu0 %1180
    %v1182 = vsel %vm183, %v1175, 0
    %v1184 = vsel %vm183, %v1177, 0
    %v1186 = vsel %vm183, %v1179, 0
    %v1188 = vsel %vm183, %v1181, 0
    %1190 = vmatpush.xpose.msra.mxu0 0.0
    %1191 = vmatpush.xpose.msra.mxu0 0.0
    %1192 = vmatpush.xpose.msra.mxu0 0.0
    %1193 = vmatpush.xpose.msra.mxu0 0.0
    %1194 = vmatpush.xpose.msra.mxu0 0.0
    %1195 = vmatpush.xpose.msra.mxu0 0.0
    %1196 = vmatpush.xpose.msra.mxu0 0.0
    %1197 = vmatpush.xpose.msra.mxu0 0.0
    %1198 = vmatpush.xpose.msra.mxu0 0.0
    %1199 = vmatpush.xpose.msra.mxu0 0.0
    %1200 = vmatpush.xpose.msra.mxu0 0.0
    %1201 = vmatpush.xpose.msra.mxu0 0.0
    %1202 = vmatpush.xpose.msra.mxu0 0.0
    %1203 = vmatpush.xpose.msra.mxu0 0.0
    %1204 = vmatpush.xpose.msra.mxu0 %v1188
    %1205 = vmatpush.xpose.msra.mxu0 %v1186
    %1206 = vmatmul.f32.gmra.mxu0 %v1182
    %v1207 = vpop.f32.mrf.mxu0
    %v1208 = vadd.f32 %v132, %v1207
    %1209 = vmatmul.f32.gmra.mxu0 %v1184
    %v1210 = vpop.f32.mrf.mxu0
    %v1211 = vadd.f32 %v133, %v1210
    %1212 = vdwg.mxu0
    %v1213 = vsel %vm217, %v1208, -inf
    %1214 = vmax.xlane.f32.xlu0 %v1213
    %v1215 = vpop.xlane.xlu0 %1214
    %v1216 = vsel %vm217, %v1211, -inf
    %1217 = vmax.xlane.f32.xlu0 %v1216
    %v1218 = vpop.xlane.xlu0 %1217
    %v1219 = vsub.f32 %v1208, %v1215
    %v1220 = vsub.f32 %v1211, %v1218
    %v1221 = vmul.f32 %v1219, 1.442695
    %v1222 = vpow.pop %v1221
    %v1223 = vmul.f32 %v1220, 1.442695
    %v1224 = vpow.pop %v1223
    %v1225 = vsel %vm217, %v1222, 0.0
    %1226 = vadd.xlane.f32.xlu0 %v1225
    %v1227 = vpop.xlane.xlu0 %1226
    %v1228 = vsel %vm217, %v1224, 0.0
    %1229 = vadd.xlane.f32.xlu0 %v1228
    %v1230 = vpop.xlane.xlu0 %1229
    %v1231 = vrcp.pop %v1227
    %v1232 = vmul.f32 %v1227, %v1231
    %v1233 = vsub.f32 1.0, %v1232
    %v1234 = vmul.f32 %v1231, %v1233
    %v1235 = vadd.f32 %v1231, %v1234
    %vm1236 = vweird.f32 %v1227
    %vm1237 = vweird.f32 %v1231
    %vm1238 = vmor %vm1236, %vm1237
    %v1239 = vsel %vm1238, %v1231, %v1235
    %v1240 = vand.u32 2147483647, %v1227
    %vm1241 = vcmp.eq.f32.partialorder %v1240, 8.507059e+37
    %v1242 = vand.u32 %v1227, 2147483648
    %v1243 = vor.u32 1.1754944e-38, %v1242
    %v1244 = vsel %vm1241, %v1243, %v1239
    %v1245 = vmul.f32 %v1222, %v1244
    %v1246 = vrcp.pop %v1230
    %v1247 = vmul.f32 %v1230, %v1246
    %v1248 = vsub.f32 1.0, %v1247
    %v1249 = vmul.f32 %v1246, %v1248
    %v1250 = vadd.f32 %v1246, %v1249
    %vm1251 = vweird.f32 %v1230
    %vm1252 = vweird.f32 %v1246
    %vm1253 = vmor %vm1251, %vm1252
    %v1254 = vsel %vm1253, %v1246, %v1250
    %v1255 = vand.u32 2147483647, %v1230
    %vm1256 = vcmp.eq.f32.partialorder %v1255, 8.507059e+37
    %v1257 = vand.u32 %v1230, 2147483648
    %v1258 = vor.u32 1.1754944e-38, %v1257
    %v1259 = vsel %vm1256, %v1258, %v1254
    %v1260 = vmul.f32 %v1224, %v1259
    %1261 = vrot.lane.b32.xlu0 %v1040, 56
    %v1262 = vpop.permute.xlu0 %1261
    %1263 = vrot.lane.b32.xlu0 %v1043, 56
    %v1264 = vpop.permute.xlu0 %1263
    %v1268 = vsel %vm217, %v1245, 0
    %v1271 = vsel %vm217, %v1260, 0
    %1273 = vmatpush.msra.mxu0 0.0
    %1274 = vmatpush.msra.mxu0 0.0
    %1275 = vmatpush.msra.mxu0 0.0
    %1276 = vmatpush.msra.mxu0 0.0
    %1277 = vmatpush.msra.mxu0 0.0
    %1278 = vmatpush.msra.mxu0 0.0
    %1279 = vmatpush.msra.mxu0 0.0
    %1280 = vmatpush.msra.mxu0 0.0
    %1281 = vmatpush.msra.mxu0 0.0
    %1282 = vmatpush.msra.mxu0 0.0
    %1283 = vmatpush.msra.mxu0 0.0
    %1284 = vmatpush.msra.mxu0 0.0
    %1285 = vmatpush.msra.mxu0 0.0
    %1286 = vmatpush.msra.mxu0 0.0
    %1287 = vmatpush.msra.mxu0 %v1264
    %1288 = vmatpush.msra.mxu0 %v1262
    %1289 = vmatmul.f32.gmra.mxu0 %v1268
    %v1290 = vpop.f32.mrf.mxu0
    %v1291 = vadd.f32 0.0, %v1290
    %1292 = vmatmul.f32.gmra.mxu0 %v1271
    %v1293 = vpop.f32.mrf.mxu0
    %v1294 = vadd.f32 0.0, %v1293
    %1295 = vdwg.mxu0
    %v1297 = vsel %vm183, %v1291, 0
    %v1300 = vsel %vm183, %v1294, 0
    %1302 = vmatpush.msra.mxu0 0.0
    %1303 = vmatpush.msra.mxu0 0.0
    %1304 = vmatpush.msra.mxu0 0.0
    %1305 = vmatpush.msra.mxu0 0.0
    %1306 = vmatpush.msra.mxu0 0.0
    %1307 = vmatpush.msra.mxu0 0.0
    %1308 = vmatpush.msra.mxu0 0.0
    %1309 = vmatpush.msra.mxu0 0.0
    %1310 = vmatpush.msra.mxu0 0.0
    %1311 = vmatpush.msra.mxu0 0.0
    %1312 = vmatpush.msra.mxu0 0.0
    %1313 = vmatpush.msra.mxu0 0.0
    %1314 = vmatpush.msra.mxu0 0.0
    %1315 = vmatpush.msra.mxu0 0.0
    %1316 = vmatpush.msra.mxu0 0.0
    %1317 = vmatpush.msra.mxu0 %v1049
    %1318 = vmatmul.f32.gmra.mxu0 %v1297
    %v1319 = vpop.f32.mrf.mxu0
    %v1320 = vadd.f32 0.0, %v1319
    %1321 = vmatmul.f32.gmra.mxu0 %v1300
    %v1322 = vpop.f32.mrf.mxu0
    %v1323 = vadd.f32 0.0, %v1322
    %1324 = vdwg.mxu0
    %v1326 = vsel %vm183, %v1169, 0
    %v1329 = vsel %vm183, %v1172, 0
    %1331 = vmatpush.msra.mxu0 0.0
    %1332 = vmatpush.msra.mxu0 0.0
    %1333 = vmatpush.msra.mxu0 0.0
    %1334 = vmatpush.msra.mxu0 0.0
    %1335 = vmatpush.msra.mxu0 0.0
    %1336 = vmatpush.msra.mxu0 0.0
    %1337 = vmatpush.msra.mxu0 0.0
    %1338 = vmatpush.msra.mxu0 0.0
    %1339 = vmatpush.msra.mxu0 0.0
    %1340 = vmatpush.msra.mxu0 0.0
    %1341 = vmatpush.msra.mxu0 0.0
    %1342 = vmatpush.msra.mxu0 0.0
    %1343 = vmatpush.msra.mxu0 0.0
    %1344 = vmatpush.msra.mxu0 0.0
    %1345 = vmatpush.msra.mxu0 0.0
    %1346 = vmatpush.msra.mxu0 %v1048
    %1347 = vmatmul.f32.gmra.mxu0 %v1326
    %v1348 = vpop.f32.mrf.mxu0
    %v1349 = vadd.f32 %v1320, %v1348
    %1350 = vmatmul.f32.gmra.mxu0 %v1329
    %v1351 = vpop.f32.mrf.mxu0
    %v1352 = vadd.f32 %v1323, %v1351
    %1353 = vdwg.mxu0
    %1354 = vrot.lane.b32.xlu0 %v1045, 112
    %v1355 = vpop.permute.xlu0 %1354
    %1356 = vrot.lane.b32.xlu0 %v1046, 112
    %v1357 = vpop.permute.xlu0 %1356
    %1358 = vrot.lane.b32.xlu0 %v1040, 80
    %v1359 = vpop.permute.xlu0 %1358
    %1360 = vrot.lane.b32.xlu0 %v1043, 80
    %v1361 = vpop.permute.xlu0 %1360
    %v1362 = vsel %vm183, %v1355, 0
    %v1364 = vsel %vm183, %v1357, 0
    %v1366 = vsel %vm183, %v1359, 0
    %v1368 = vsel %vm183, %v1361, 0
    %1370 = vmatpush.xpose.msra.mxu0 0.0
    %1371 = vmatpush.xpose.msra.mxu0 0.0
    %1372 = vmatpush.xpose.msra.mxu0 0.0
    %1373 = vmatpush.xpose.msra.mxu0 0.0
    %1374 = vmatpush.xpose.msra.mxu0 0.0
    %1375 = vmatpush.xpose.msra.mxu0 0.0
    %1376 = vmatpush.xpose.msra.mxu0 0.0
    %1377 = vmatpush.xpose.msra.mxu0 0.0
    %1378 = vmatpush.xpose.msra.mxu0 0.0
    %1379 = vmatpush.xpose.msra.mxu0 0.0
    %1380 = vmatpush.xpose.msra.mxu0 0.0
    %1381 = vmatpush.xpose.msra.mxu0 0.0
    %1382 = vmatpush.xpose.msra.mxu0 0.0
    %1383 = vmatpush.xpose.msra.mxu0 0.0
    %1384 = vmatpush.xpose.msra.mxu0 %v1368
    %1385 = vmatpush.xpose.msra.mxu0 %v1366
    %1386 = vmatmul.f32.gmra.mxu0 %v1362
    %v1387 = vpop.f32.mrf.mxu0
    %v1388 = vadd.f32 %v132, %v1387
    %1389 = vmatmul.f32.gmra.mxu0 %v1364
    %v1390 = vpop.f32.mrf.mxu0
    %v1391 = vadd.f32 %v133, %v1390
    %1392 = vdwg.mxu0
    %v1393 = vsel %vm217, %v1388, -inf
    %1394 = vmax.xlane.f32.xlu0 %v1393
    %v1395 = vpop.xlane.xlu0 %1394
    %v1396 = vsel %vm217, %v1391, -inf
    %1397 = vmax.xlane.f32.xlu0 %v1396
    %v1398 = vpop.xlane.xlu0 %1397
    %v1399 = vsub.f32 %v1388, %v1395
    %v1400 = vsub.f32 %v1391, %v1398
    %v1401 = vmul.f32 %v1399, 1.442695
    %v1402 = vpow.pop %v1401
    %v1403 = vmul.f32 %v1400, 1.442695
    %v1404 = vpow.pop %v1403
    %v1405 = vsel %vm217, %v1402, 0.0
    %1406 = vadd.xlane.f32.xlu0 %v1405
    %v1407 = vpop.xlane.xlu0 %1406
    %v1408 = vsel %vm217, %v1404, 0.0
    %1409 = vadd.xlane.f32.xlu0 %v1408
    %v1410 = vpop.xlane.xlu0 %1409
    %v1411 = vrcp.pop %v1407
    %v1412 = vmul.f32 %v1407, %v1411
    %v1413 = vsub.f32 1.0, %v1412
    %v1414 = vmul.f32 %v1411, %v1413
    %v1415 = vadd.f32 %v1411, %v1414
    %vm1416 = vweird.f32 %v1407
    %vm1417 = vweird.f32 %v1411
    %vm1418 = vmor %vm1416, %vm1417
    %v1419 = vsel %vm1418, %v1411, %v1415
    %v1420 = vand.u32 2147483647, %v1407
    %vm1421 = vcmp.eq.f32.partialorder %v1420, 8.507059e+37
    %v1422 = vand.u32 %v1407, 2147483648
    %v1423 = vor.u32 1.1754944e-38, %v1422
    %v1424 = vsel %vm1421, %v1423, %v1419
    %v1425 = vmul.f32 %v1402, %v1424
    %v1426 = vrcp.pop %v1410
    %v1427 = vmul.f32 %v1410, %v1426
    %v1428 = vsub.f32 1.0, %v1427
    %v1429 = vmul.f32 %v1426, %v1428
    %v1430 = vadd.f32 %v1426, %v1429
    %vm1431 = vweird.f32 %v1410
    %vm1432 = vweird.f32 %v1426
    %vm1433 = vmor %vm1431, %vm1432
    %v1434 = vsel %vm1433, %v1426, %v1430
    %v1435 = vand.u32 2147483647, %v1410
    %vm1436 = vcmp.eq.f32.partialorder %v1435, 8.507059e+37
    %v1437 = vand.u32 %v1410, 2147483648
    %v1438 = vor.u32 1.1754944e-38, %v1437
    %v1439 = vsel %vm1436, %v1438, %v1434
    %v1440 = vmul.f32 %v1404, %v1439
    %1441 = vrot.lane.b32.xlu0 %v1040, 48
    %v1442 = vpop.permute.xlu0 %1441
    %1443 = vrot.lane.b32.xlu0 %v1043, 48
    %v1444 = vpop.permute.xlu0 %1443
    %v1448 = vsel %vm217, %v1425, 0
    %v1451 = vsel %vm217, %v1440, 0
    %1453 = vmatpush.msra.mxu0 0.0
    %1454 = vmatpush.msra.mxu0 0.0
    %1455 = vmatpush.msra.mxu0 0.0
    %1456 = vmatpush.msra.mxu0 0.0
    %1457 = vmatpush.msra.mxu0 0.0
    %1458 = vmatpush.msra.mxu0 0.0
    %1459 = vmatpush.msra.mxu0 0.0
    %1460 = vmatpush.msra.mxu0 0.0
    %1461 = vmatpush.msra.mxu0 0.0
    %1462 = vmatpush.msra.mxu0 0.0
    %1463 = vmatpush.msra.mxu0 0.0
    %1464 = vmatpush.msra.mxu0 0.0
    %1465 = vmatpush.msra.mxu0 0.0
    %1466 = vmatpush.msra.mxu0 0.0
    %1467 = vmatpush.msra.mxu0 %v1444
    %1468 = vmatpush.msra.mxu0 %v1442
    %1469 = vmatmul.f32.gmra.mxu0 %v1448
    %v1470 = vpop.f32.mrf.mxu0
    %v1471 = vadd.f32 0.0, %v1470
    %1472 = vmatmul.f32.gmra.mxu0 %v1451
    %v1473 = vpop.f32.mrf.mxu0
    %v1474 = vadd.f32 0.0, %v1473
    %1475 = vdwg.mxu0
    %v1477 = vsel %vm183, %v1471, 0
    %v1480 = vsel %vm183, %v1474, 0
    %1482 = vmatpush.msra.mxu0 0.0
    %1483 = vmatpush.msra.mxu0 0.0
    %1484 = vmatpush.msra.mxu0 0.0
    %1485 = vmatpush.msra.mxu0 0.0
    %1486 = vmatpush.msra.mxu0 0.0
    %1487 = vmatpush.msra.mxu0 0.0
    %1488 = vmatpush.msra.mxu0 0.0
    %1489 = vmatpush.msra.mxu0 0.0
    %1490 = vmatpush.msra.mxu0 0.0
    %1491 = vmatpush.msra.mxu0 0.0
    %1492 = vmatpush.msra.mxu0 0.0
    %1493 = vmatpush.msra.mxu0 0.0
    %1494 = vmatpush.msra.mxu0 0.0
    %1495 = vmatpush.msra.mxu0 0.0
    %1496 = vmatpush.msra.mxu0 0.0
    %1497 = vmatpush.msra.mxu0 %v1050
    %1498 = vmatmul.f32.gmra.mxu0 %v1477
    %v1499 = vpop.f32.mrf.mxu0
    %v1500 = vadd.f32 0.0, %v1499
    %1501 = vmatmul.f32.gmra.mxu0 %v1480
    %v1502 = vpop.f32.mrf.mxu0
    %v1503 = vadd.f32 0.0, %v1502
    %1504 = vdwg.mxu0
    %v1505 = vadd.f32 %v1349, %v1500
    %v1506 = vadd.f32 %v1352, %v1503
    %1507 = vrot.lane.b32.xlu0 %v1045, 104
    %v1508 = vpop.permute.xlu0 %1507
    %1509 = vrot.lane.b32.xlu0 %v1046, 104
    %v1510 = vpop.permute.xlu0 %1509
    %1511 = vrot.lane.b32.xlu0 %v1040, 72
    %v1512 = vpop.permute.xlu0 %1511
    %1513 = vrot.lane.b32.xlu0 %v1043, 72
    %v1514 = vpop.permute.xlu0 %1513
    %v1515 = vsel %vm183, %v1508, 0
    %v1517 = vsel %vm183, %v1510, 0
    %v1519 = vsel %vm183, %v1512, 0
    %v1521 = vsel %vm183, %v1514, 0
    %1523 = vmatpush.xpose.msra.mxu0 0.0
    %1524 = vmatpush.xpose.msra.mxu0 0.0
    %1525 = vmatpush.xpose.msra.mxu0 0.0
    %1526 = vmatpush.xpose.msra.mxu0 0.0
    %1527 = vmatpush.xpose.msra.mxu0 0.0
    %1528 = vmatpush.xpose.msra.mxu0 0.0
    %1529 = vmatpush.xpose.msra.mxu0 0.0
    %1530 = vmatpush.xpose.msra.mxu0 0.0
    %1531 = vmatpush.xpose.msra.mxu0 0.0
    %1532 = vmatpush.xpose.msra.mxu0 0.0
    %1533 = vmatpush.xpose.msra.mxu0 0.0
    %1534 = vmatpush.xpose.msra.mxu0 0.0
    %1535 = vmatpush.xpose.msra.mxu0 0.0
    %1536 = vmatpush.xpose.msra.mxu0 0.0
    %1537 = vmatpush.xpose.msra.mxu0 %v1521
    %1538 = vmatpush.xpose.msra.mxu0 %v1519
    %1539 = vmatmul.f32.gmra.mxu0 %v1515
    %v1540 = vpop.f32.mrf.mxu0
    %v1541 = vadd.f32 %v132, %v1540
    %1542 = vmatmul.f32.gmra.mxu0 %v1517
    %v1543 = vpop.f32.mrf.mxu0
    %v1544 = vadd.f32 %v133, %v1543
    %1545 = vdwg.mxu0
    %v1546 = vsel %vm217, %v1541, -inf
    %1547 = vmax.xlane.f32.xlu0 %v1546
    %v1548 = vpop.xlane.xlu0 %1547
    %v1549 = vsel %vm217, %v1544, -inf
    %1550 = vmax.xlane.f32.xlu0 %v1549
    %v1551 = vpop.xlane.xlu0 %1550
    %v1552 = vsub.f32 %v1541, %v1548
    %v1553 = vsub.f32 %v1544, %v1551
    %v1554 = vmul.f32 %v1552, 1.442695
    %v1555 = vpow.pop %v1554
    %v1556 = vmul.f32 %v1553, 1.442695
    %v1557 = vpow.pop %v1556
    %v1558 = vsel %vm217, %v1555, 0.0
    %1559 = vadd.xlane.f32.xlu0 %v1558
    %v1560 = vpop.xlane.xlu0 %1559
    %v1561 = vsel %vm217, %v1557, 0.0
    %1562 = vadd.xlane.f32.xlu0 %v1561
    %v1563 = vpop.xlane.xlu0 %1562
    %v1564 = vrcp.pop %v1560
    %v1565 = vmul.f32 %v1560, %v1564
    %v1566 = vsub.f32 1.0, %v1565
    %v1567 = vmul.f32 %v1564, %v1566
    %v1568 = vadd.f32 %v1564, %v1567
    %vm1569 = vweird.f32 %v1560
    %vm1570 = vweird.f32 %v1564
    %vm1571 = vmor %vm1569, %vm1570
    %v1572 = vsel %vm1571, %v1564, %v1568
    %v1573 = vand.u32 2147483647, %v1560
    %vm1574 = vcmp.eq.f32.partialorder %v1573, 8.507059e+37
    %v1575 = vand.u32 %v1560, 2147483648
    %v1576 = vor.u32 1.1754944e-38, %v1575
    %v1577 = vsel %vm1574, %v1576, %v1572
    %v1578 = vmul.f32 %v1555, %v1577
    %v1579 = vrcp.pop %v1563
    %v1580 = vmul.f32 %v1563, %v1579
    %v1581 = vsub.f32 1.0, %v1580
    %v1582 = vmul.f32 %v1579, %v1581
    %v1583 = vadd.f32 %v1579, %v1582
    %vm1584 = vweird.f32 %v1563
    %vm1585 = vweird.f32 %v1579
    %vm1586 = vmor %vm1584, %vm1585
    %v1587 = vsel %vm1586, %v1579, %v1583
    %v1588 = vand.u32 2147483647, %v1563
    %vm1589 = vcmp.eq.f32.partialorder %v1588, 8.507059e+37
    %v1590 = vand.u32 %v1563, 2147483648
    %v1591 = vor.u32 1.1754944e-38, %v1590
    %v1592 = vsel %vm1589, %v1591, %v1587
    %v1593 = vmul.f32 %v1557, %v1592
    %1594 = vrot.lane.b32.xlu0 %v1040, 40
    %v1595 = vpop.permute.xlu0 %1594
    %1596 = vrot.lane.b32.xlu0 %v1043, 40
    %v1597 = vpop.permute.xlu0 %1596
    %v1601 = vsel %vm217, %v1578, 0
    %v1604 = vsel %vm217, %v1593, 0
    %1606 = vmatpush.msra.mxu0 0.0
    %1607 = vmatpush.msra.mxu0 0.0
    %1608 = vmatpush.msra.mxu0 0.0
    %1609 = vmatpush.msra.mxu0 0.0
    %1610 = vmatpush.msra.mxu0 0.0
    %1611 = vmatpush.msra.mxu0 0.0
    %1612 = vmatpush.msra.mxu0 0.0
    %1613 = vmatpush.msra.mxu0 0.0
    %1614 = vmatpush.msra.mxu0 0.0
    %1615 = vmatpush.msra.mxu0 0.0
    %1616 = vmatpush.msra.mxu0 0.0
    %1617 = vmatpush.msra.mxu0 0.0
    %1618 = vmatpush.msra.mxu0 0.0
    %1619 = vmatpush.msra.mxu0 0.0
    %1620 = vmatpush.msra.mxu0 %v1597
    %1621 = vmatpush.msra.mxu0 %v1595
    %1622 = vmatmul.f32.gmra.mxu0 %v1601
    %v1623 = vpop.f32.mrf.mxu0
    %v1624 = vadd.f32 0.0, %v1623
    %1625 = vmatmul.f32.gmra.mxu0 %v1604
    %v1626 = vpop.f32.mrf.mxu0
    %v1627 = vadd.f32 0.0, %v1626
    %1628 = vdwg.mxu0
    %v1630 = vsel %vm183, %v1624, 0
    %v1633 = vsel %vm183, %v1627, 0
    %1635 = vmatpush.msra.mxu0 0.0
    %1636 = vmatpush.msra.mxu0 0.0
    %1637 = vmatpush.msra.mxu0 0.0
    %1638 = vmatpush.msra.mxu0 0.0
    %1639 = vmatpush.msra.mxu0 0.0
    %1640 = vmatpush.msra.mxu0 0.0
    %1641 = vmatpush.msra.mxu0 0.0
    %1642 = vmatpush.msra.mxu0 0.0
    %1643 = vmatpush.msra.mxu0 0.0
    %1644 = vmatpush.msra.mxu0 0.0
    %1645 = vmatpush.msra.mxu0 0.0
    %1646 = vmatpush.msra.mxu0 0.0
    %1647 = vmatpush.msra.mxu0 0.0
    %1648 = vmatpush.msra.mxu0 0.0
    %1649 = vmatpush.msra.mxu0 0.0
    %1650 = vmatpush.msra.mxu0 %v1051
    %1651 = vmatmul.f32.gmra.mxu0 %v1630
    %v1652 = vpop.f32.mrf.mxu0
    %v1653 = vadd.f32 0.0, %v1652
    %1654 = vmatmul.f32.gmra.mxu0 %v1633
    %v1655 = vpop.f32.mrf.mxu0
    %v1656 = vadd.f32 0.0, %v1655
    %1657 = vdwg.mxu0
    %v1658 = vadd.f32 %v1505, %v1653
    %v1659 = vadd.f32 %v1506, %v1656
    %s1660 = scalar_lea.vmem %s7, 1
    %v1661 = vld [vmem:[%s1660] sm:$0x1]
    %v1663 = vperm.slane %v1661, 0
    %v1665 = vadd.f32 %v1658, %v1663
    %v1666 = vadd.f32 %v1659, %v1663
    %v1667 = vadd.f32 %v1665, %v1004
    %v1668 = vadd.f32 %v1666, %v1005
    %s1669 = scalar_lea.vmem %s8, 1
    %v1670 = vld [vmem:[%s1669] sm:$0x1]
    %s1671 = scalar_lea.vmem %s9, 1
    %v1672 = vld [vmem:[%s1671] sm:$0x1]
    %v1673 = vsel %vm70, %v1667, 0.0
    %1674 = vadd.xlane.f32.xlu0 %v1673
    %v1675 = vpop.xlane.xlu0 %1674
    %v1676 = vsel %vm70, %v1668, 0.0
    %1677 = vadd.xlane.f32.xlu0 %v1676
    %v1678 = vpop.xlane.xlu0 %1677
    %v1679 = vmul.f32 %v1675, %v83
    %v1680 = vmul.f32 %v1678, %v83
    %v1681 = vsub.f32 %v1667, %v1679
    %v1682 = vsub.f32 %v1668, %v1680
    %v1683 = vmul.f32 %v1681, %v1681
    %v1684 = vmul.f32 %v1682, %v1682
    %v1685 = vsel %vm70, %v1683, 0.0
    %1686 = vadd.xlane.f32.xlu0 %v1685
    %v1687 = vpop.xlane.xlu0 %1686
    %v1688 = vsel %vm70, %v1684, 0.0
    %1689 = vadd.xlane.f32.xlu0 %v1688
    %v1690 = vpop.xlane.xlu0 %1689
    %v1691 = vmul.f32 %v1687, %v83
    %v1692 = vmul.f32 %v1690, %v83
    %v1693 = vadd.f32 %v1691, 1e-12
    %v1694 = vadd.f32 %v1692, 1e-12
    %v1695 = vrsqrt.pop %v1693
    %v1696 = vmul.f32 %v1695, %v1693
    %v1697 = vmul.f32 %v1696, %v1695
    %v1698 = vmul.f32 0.5, %v1697
    %v1699 = vsub.f32 1.5, %v1698
    %v1700 = vmul.f32 %v1695, %v1699
    %vm1701 = vweird.f32 %v1693
    %vm1702 = vweird.f32 %v1695
    %vm1703 = vmor %vm1701, %vm1702
    %v1704 = vsel %vm1703, %v1695, %v1700
    %v1705 = vrsqrt.pop %v1694
    %v1706 = vmul.f32 %v1705, %v1694
    %v1707 = vmul.f32 %v1706, %v1705
    %v1708 = vmul.f32 0.5, %v1707
    %v1709 = vsub.f32 1.5, %v1708
    %v1710 = vmul.f32 %v1705, %v1709
    %vm1711 = vweird.f32 %v1694
    %vm1712 = vweird.f32 %v1705
    %vm1713 = vmor %vm1711, %vm1712
    %v1714 = vsel %vm1713, %v1705, %v1710
    %v1715 = vmul.f32 %v1681, %v1704
    %v1716 = vmul.f32 %v1682, %v1714
    %v1718 = vperm.slane %v1670, 0
    %v1720 = vmul.f32 %v1715, %v1718
    %v1721 = vmul.f32 %v1716, %v1718
    %v1723 = vperm.slane %v1672, 0
    %v1725 = vadd.f32 %v1720, %v1723
    %v1726 = vadd.f32 %v1721, %v1723
    %s1727 = scalar_lea.vmem %s10, 32
    %v1728 = vld [vmem:[%s1727] sm:$0xff]
    %v1729 = vld [vmem:[%s1727 + $0x8] sm:$0xff]
    %v1730 = vld [vmem:[%s1727 + $0x10] sm:$0xff]
    %v1731 = vld [vmem:[%s1727 + $0x18] sm:$0xff]
    %s1732 = scalar_lea.vmem %s11, 1
    %v1733 = vld [vmem:[%s1732] sm:$0x1]
    %v1735 = vperm.slane %v1733, 0
    %v1738 = vsel %vm70, %v1725, 0
    %v1741 = vsel %vm70, %v1726, 0
    %1743 = vmatpush.msra.mxu0 0.0
    %1744 = vmatpush.msra.mxu0 0.0
    %1745 = vmatpush.msra.mxu0 0.0
    %1746 = vmatpush.msra.mxu0 0.0
    %1747 = vmatpush.msra.mxu0 0.0
    %1748 = vmatpush.msra.mxu0 0.0
    %1749 = vmatpush.msra.mxu0 0.0
    %1750 = vmatpush.msra.mxu0 0.0
    %1751 = vmatpush.msra.mxu0 0.0
    %1752 = vmatpush.msra.mxu0 0.0
    %1753 = vmatpush.msra.mxu0 0.0
    %1754 = vmatpush.msra.mxu0 0.0
    %1755 = vmatpush.msra.mxu0 %v1731
    %1756 = vmatpush.msra.mxu0 %v1730
    %1757 = vmatpush.msra.mxu0 %v1729
    %1758 = vmatpush.msra.mxu0 %v1728
    %1759 = vmatmul.f32.gmra.mxu0 %v1738
    %v1760 = vpop.f32.mrf.mxu0
    %v1761 = vadd.f32 %v1735, %v1760
    %1762 = vmatmul.f32.gmra.mxu0 %v1741
    %v1763 = vpop.f32.mrf.mxu0
    %v1764 = vadd.f32 %v1735, %v1763
    %1765 = vdwg.mxu0
    %v1766 = vmul.f32 %v1761, 0.5
    %v1767 = vmul.f32 %v1764, 0.5
    %v1768 = vmul.f32 %v1761, 0.044715
    %v1769 = vmul.f32 %v1764, 0.044715
    %v1770 = vmul.f32 %v1768, %v1761
    %v1771 = vmul.f32 %v1769, %v1764
    %v1772 = vmul.f32 %v1770, %v1761
    %v1773 = vmul.f32 %v1771, %v1764
    %v1774 = vadd.f32 %v1761, %v1772
    %v1775 = vadd.f32 %v1764, %v1773
    %v1776 = vmul.f32 %v1774, 0.7978846
    %v1777 = vmul.f32 %v1775, 0.7978846
    %v1778 = vtanh.pop %v1776
    %v1779 = vtanh.pop %v1777
    %v1780 = vadd.f32 %v1778, 1.0
    %v1781 = vadd.f32 %v1779, 1.0
    %v1782 = vmul.f32 %v1766, %v1780
    %v1783 = vmul.f32 %v1767, %v1781
    %s1784 = scalar_lea.vmem %s12, 64
    %v1785 = vld [vmem:[%s1784] sm:$0xff]
    %v1786 = vld [vmem:[%s1784 + $0x8] sm:$0xff]
    %v1787 = vld [vmem:[%s1784 + $0x10] sm:$0xff]
    %v1788 = vld [vmem:[%s1784 + $0x18] sm:$0xff]
    %v1789 = vld [vmem:[%s1784 + $0x20] sm:$0xff]
    %v1790 = vld [vmem:[%s1784 + $0x28] sm:$0xff]
    %v1791 = vld [vmem:[%s1784 + $0x30] sm:$0xff]
    %v1792 = vld [vmem:[%s1784 + $0x38] sm:$0xff]
    %s1793 = scalar_lea.vmem %s13, 1
    %v1794 = vld [vmem:[%s1793] sm:$0x1]
    %v1796 = vperm.slane %v1794, 0
    %v1799 = vsel %vm918, %v1782, 0
    %v1802 = vsel %vm918, %v1783, 0
    %1804 = vmatpush.msra.mxu0 0.0
    %1805 = vmatpush.msra.mxu0 0.0
    %1806 = vmatpush.msra.mxu0 0.0
    %1807 = vmatpush.msra.mxu0 0.0
    %1808 = vmatpush.msra.mxu0 0.0
    %1809 = vmatpush.msra.mxu0 0.0
    %1810 = vmatpush.msra.mxu0 0.0
    %1811 = vmatpush.msra.mxu0 0.0
    %1812 = vmatpush.msra.mxu0 %v1792
    %1813 = vmatpush.msra.mxu0 %v1791
    %1814 = vmatpush.msra.mxu0 %v1790
    %1815 = vmatpush.msra.mxu0 %v1789
    %1816 = vmatpush.msra.mxu0 %v1788
    %1817 = vmatpush.msra.mxu0 %v1787
    %1818 = vmatpush.msra.mxu0 %v1786
    %1819 = vmatpush.msra.mxu0 %v1785
    %1820 = vmatmul.f32.gmra.mxu0 %v1799
    %v1821 = vpop.f32.mrf.mxu0
    %v1822 = vadd.f32 %v1796, %v1821
    %1823 = vmatmul.f32.gmra.mxu0 %v1802
    %v1824 = vpop.f32.mrf.mxu0
    %v1825 = vadd.f32 %v1796, %v1824
    %1826 = vdwg.mxu0
    %v1827 = vadd.f32 %v1822, %v1725
    %v1828 = vadd.f32 %v1825, %v1726
    %s1829 = scalar_lea.vmem %s14, 1
    %v1830 = vld [vmem:[%s1829] sm:$0x1]
    %s1831 = scalar_lea.vmem %s15, 1
    %v1832 = vld [vmem:[%s1831] sm:$0x1]
    %v1833 = vsel %vm70, %v1827, 0.0
    %1834 = vadd.xlane.f32.xlu0 %v1833
    %v1835 = vpop.xlane.xlu0 %1834
    %v1836 = vsel %vm70, %v1828, 0.0
    %1837 = vadd.xlane.f32.xlu0 %v1836
    %v1838 = vpop.xlane.xlu0 %1837
    %v1839 = vmul.f32 %v1835, %v83
    %v1840 = vmul.f32 %v1838, %v83
    %v1841 = vsub.f32 %v1827, %v1839
    %v1842 = vsub.f32 %v1828, %v1840
    %v1843 = vmul.f32 %v1841, %v1841
    %v1844 = vmul.f32 %v1842, %v1842
    %v1845 = vsel %vm70, %v1843, 0.0
    %1846 = vadd.xlane.f32.xlu0 %v1845
    %v1847 = vpop.xlane.xlu0 %1846
    %v1848 = vsel %vm70, %v1844, 0.0
    %1849 = vadd.xlane.f32.xlu0 %v1848
    %v1850 = vpop.xlane.xlu0 %1849
    %v1851 = vmul.f32 %v1847, %v83
    %v1852 = vmul.f32 %v1850, %v83
    %v1853 = vadd.f32 %v1851, 1e-12
    %v1854 = vadd.f32 %v1852, 1e-12
    %v1855 = vrsqrt.pop %v1853
    %v1856 = vmul.f32 %v1855, %v1853
    %v1857 = vmul.f32 %v1856, %v1855
    %v1858 = vmul.f32 0.5, %v1857
    %v1859 = vsub.f32 1.5, %v1858
    %v1860 = vmul.f32 %v1855, %v1859
    %vm1861 = vweird.f32 %v1853
    %vm1862 = vweird.f32 %v1855
    %vm1863 = vmor %vm1861, %vm1862
    %v1864 = vsel %vm1863, %v1855, %v1860
    %v1865 = vrsqrt.pop %v1854
    %v1866 = vmul.f32 %v1865, %v1854
    %v1867 = vmul.f32 %v1866, %v1865
    %v1868 = vmul.f32 0.5, %v1867
    %v1869 = vsub.f32 1.5, %v1868
    %v1870 = vmul.f32 %v1865, %v1869
    %vm1871 = vweird.f32 %v1854
    %vm1872 = vweird.f32 %v1865
    %vm1873 = vmor %vm1871, %vm1872
    %v1874 = vsel %vm1873, %v1865, %v1870
    %v1875 = vmul.f32 %v1841, %v1864
    %v1876 = vmul.f32 %v1842, %v1874
    %v1878 = vperm.slane %v1830, 0
    %v1880 = vmul.f32 %v1875, %v1878
    %v1881 = vmul.f32 %v1876, %v1878
    %v1883 = vperm.slane %v1832, 0
    %v1885 = vadd.f32 %v1880, %v1883
    %v1886 = vadd.f32 %v1881, %v1883
    %v1888 = vrot.slane %v1886, 7
    %vm1890 = vcmask 1040384
    %v1891 = vsel %vm1890, %v1885, %v1888
    %v1892 = vld [vmem:[%s16] sm:$0xff]
    %v1893 = vld [vmem:[%s16 + $0x8] sm:$0xff]
    %v1894 = vld [vmem:[%s16 + $0x10] sm:$0xff]
    %v1895 = vld [vmem:[%s16 + $0x18] sm:$0xff]
    %v1896 = vld [vmem:[%s17] sm:$0x1]
    %v1898 = vperm.slane %v1896, 0
    %v1901 = vsel %vm70, %v1891, 0
    %1903 = vmatpush.msra.mxu0 0.0
    %1904 = vmatpush.msra.mxu0 0.0
    %1905 = vmatpush.msra.mxu0 0.0
    %1906 = vmatpush.msra.mxu0 0.0
    %1907 = vmatpush.msra.mxu0 0.0
    %1908 = vmatpush.msra.mxu0 0.0
    %1909 = vmatpush.msra.mxu0 0.0
    %1910 = vmatpush.msra.mxu0 0.0
    %1911 = vmatpush.msra.mxu0 0.0
    %1912 = vmatpush.msra.mxu0 0.0
    %1913 = vmatpush.msra.mxu0 0.0
    %1914 = vmatpush.msra.mxu0 0.0
    %1915 = vmatpush.msra.mxu0 %v1895
    %1916 = vmatpush.msra.mxu0 %v1894
    %1917 = vmatpush.msra.mxu0 %v1893
    %1918 = vmatpush.msra.mxu0 %v1892
    %1919 = vmatmul.f32.gmra.mxu0 %v1901
    %v1920 = vpop.f32.mrf.mxu0
    %v1921 = vadd.f32 %v1898, %v1920
    %1922 = vdwg.mxu0
    %v1923 = vtanh.pop %v1921
    %v1924 = vld [vmem:[%s18] sm:$0xff]
    %v1925 = vld [vmem:[%s18 + $0x8] sm:$0xff]
    %v1926 = vld [vmem:[%s18 + $0x10] sm:$0xff]
    %v1927 = vld [vmem:[%s18 + $0x18] sm:$0xff]
    %v1928 = vld [vmem:[%s19] sm:$0x1]
    %v1930 = vperm.slane %v1928, 0
    %v1933 = vsel %vm70, %v1923, 0
    %1935 = vmatpush.msra.mxu0 0.0
    %1936 = vmatpush.msra.mxu0 0.0
    %1937 = vmatpush.msra.mxu0 0.0
    %1938 = vmatpush.msra.mxu0 0.0
    %1939 = vmatpush.msra.mxu0 0.0
    %1940 = vmatpush.msra.mxu0 0.0
    %1941 = vmatpush.msra.mxu0 0.0
    %1942 = vmatpush.msra.mxu0 0.0
    %1943 = vmatpush.msra.mxu0 0.0
    %1944 = vmatpush.msra.mxu0 0.0
    %1945 = vmatpush.msra.mxu0 0.0
    %1946 = vmatpush.msra.mxu0 0.0
    %1947 = vmatpush.msra.mxu0 %v1927
    %1948 = vmatpush.msra.mxu0 %v1926
    %1949 = vmatpush.msra.mxu0 %v1925
    %1950 = vmatpush.msra.mxu0 %v1924
    %1951 = vmatmul.f32.gmra.mxu0 %v1933
    %v1952 = vpop.f32.mrf.mxu0
    %v1953 = vadd.f32 %v1930, %v1952
    %1954 = vdwg.mxu0
    %vm1955 = vcmask 9216
    %1956 = vst.msk [vmem:[#allocation2] sm:$0x3] %vm1955, %v1953
    // Predicated region
    $region82: #{bert_sst2_forward.1} parent=1 // pred_check
      _
    $region83: #{bert_sst2_forward.1} parent=1 // pred_check_branch
      %1958 = sbr.rel (0) target = $region85
    $region84: #{bert_sst2_forward.1} parent=1 // pred_region
      %1960 = vsyncadd [#allocation3], 0
      %s1962 = sshll.u32 [#allocation2], 4
      %s1963 = int_to_ptr.vmem [resolvable:$true] %s1962
      %s1964 = sshll.u32 %s20, 4
      %s1965 = int_to_ptr.hbm [resolvable:$true] %s1964
      %1967 = dma.vmem_to_hbm [thread:$0]  %s1963, 32, %s1965, [#allocation3]
    $region85: #{bert_sst2_forward.1} parent=1 // pred_fallthru
      _
    // Predicated region
    $region86: #{bert_sst2_forward.1} parent=1 // pred_check
      _
    $region87: #{bert_sst2_forward.1} parent=1 // pred_check_branch
      %1969 = sbr.rel (0) target = $region89
    $region88: #{bert_sst2_forward.1} parent=1 // pred_region
      %1971 = dma.done [#allocation3], 32
    $region89: #{bert_sst2_forward.1} parent=1 // pred_fallthru
      _
    %1972 = vsyncpa [#allocation3], 1

</llo_original>
